<compile_context>
chip_gen: v5e
topology: v5e:2x2
jax: 0.10.0
libtpu: 0.0.40
codegen_flags: <defaults>
</compile_context>

<pallas_src>
import functools
import math

import jax
import jax.numpy as jnp
from jax.experimental import pallas as pl
from jax.experimental.pallas import tpu as pltpu


def _round_up(x, m):
    return (x + m - 1) // m * m


def _pick_dst_tile(n_dst, dst_tile):
    """Dst-row tile: multiple of 32 sublanes; >=2 tiles when rows allow so the
    "parallel" dst axis can split across TensorCores (v7x megacore)."""
    if n_dst <= 32:
        return 32
    return min(dst_tile, _round_up((n_dst + 1) // 2, 32))


# ----------------------------------------------------------------------------
# Pallas kernels
# ----------------------------------------------------------------------------
def _edge_kernel(q_ref, k_ref, v_ref, adj_ref, out_ref, m_sc, l_sc, acc_sc,
                 *, n_heads, d_k):
    """Masked online-softmax attention for one canonical edge type.

    Grid = (dst_tiles [parallel], src_tiles [arbitrary / streamed]).
      q_ref : (TD, H*d_k)      bf16, pri/sqrt(d_k) folded in
      k_ref : (TS, H*d_k)      bf16, relation_att folded in
      v_ref : (TS, H*(d_k+1))  bf16, relation_msg folded in + ones lane per head
      adj   : (TD, TS)         int8 {0,1}, adj[dst, src]
    Scratch persists across the src axis: m/l (TD, H), acc (TD, H*d_k), all f32.
    """
    s_idx = pl.program_id(1)
    n_src_steps = pl.num_programs(1)
    dke = d_k + 1
    td = acc_sc.shape[0]

    @pl.when(s_idx == 0)
    def _init():
        m_sc[...] = jnp.full_like(m_sc, -jnp.inf)
        l_sc[...] = jnp.zeros_like(l_sc)
        acc_sc[...] = jnp.zeros_like(acc_sc)

    q = q_ref[...]                                   # (TD, D)          bf16
    k = k_ref[...]                                   # (TS, D)          bf16
    v = v_ref[...]                                   # (TS, H*(dk+1))   bf16
    # Additive mask bias, one pass over (TD, TS), shared across heads.
    bias = (adj_ref[...].astype(jnp.float32) - jnp.float32(1.0)) * jnp.float32(1e30)

    m_prev = m_sc[...]                               # (TD, H)
    l_prev = l_sc[...]                               # (TD, H)

    m_cols, a_cols, l_cols, pv_cols = [], [], [], []
    for hh in range(n_heads):                        # static unroll over heads
        qh = q[:, hh * d_k:(hh + 1) * d_k]           # (TD, dk)   bf16, pre-scaled
        kh = k[:, hh * d_k:(hh + 1) * d_k]           # (TS, dk)   bf16
        vh = v[:, hh * dke:(hh + 1) * dke]           # (TS, dk+1) bf16 (last lane = 1)

        # scores[dst, src] = <q[dst], k[src]> : bf16 MXU operands, f32 accumulate
        s = jax.lax.dot_general(qh, kh, (((1,), (1,)), ((), ())),
                                preferred_element_type=jnp.float32)   # (TD, TS)
        s = s + bias

        # online (flash-style) masked softmax over the streamed src axis (f32)
        m_ph = m_prev[:, hh:hh + 1]                                   # (TD, 1)
        m_nh = jnp.maximum(m_ph, jnp.max(s, axis=1, keepdims=True))
        a_h = jnp.exp(m_ph - m_nh)                                    # (TD, 1)
        p = jnp.exp(s - m_nh)                    # masked entries underflow to 0
        # P·V in bf16 (f32 acc); the ones lane folds sum(p) into the same MXU op.
        pv = jnp.dot(p.astype(jnp.bfloat16), vh,
                     preferred_element_type=jnp.float32)              # (TD, dk+1)

        m_cols.append(m_nh)
        a_cols.append(a_h)
        l_cols.append(a_h * l_prev[:, hh:hh + 1] + pv[:, d_k:])
        pv_cols.append(pv[:, :d_k])

    # One full-width store per step for m/l and ONE full-width acc read-modify-write.
    m_sc[...] = jnp.concatenate(m_cols, axis=1)                       # (TD, H)
    l_sc[...] = jnp.concatenate(l_cols, axis=1)                       # (TD, H)
    a_full = jnp.concatenate(
        [jnp.broadcast_to(a, (td, d_k)) for a in a_cols], axis=1)     # (TD, D)
    pv_full = jnp.concatenate(pv_cols, axis=1)                        # (TD, D)
    acc_sc[...] = a_full * acc_sc[...] + pv_full

    @pl.when(s_idx == n_src_steps - 1)
    def _finalize():
        inv = pl.reciprocal(jnp.maximum(l_sc[...], jnp.float32(1e-9)),
                            approx=True)                              # (TD, H) EUP
        inv_full = jnp.concatenate(
            [jnp.broadcast_to(inv[:, hh:hh + 1], (td, d_k))
             for hh in range(n_heads)], axis=1)                       # (TD, D)
        # dst rows with zero in-degree (max score stayed ~ -1e30) -> zero message,
        # matching edge_softmax semantics (adj is head-independent -> head 0 suffices).
        zero_row = m_sc[:, 0:1] < jnp.float32(-1e25)                  # (TD, 1)
        out_ref[...] = jnp.where(zero_row, jnp.float32(0.0),
                                 acc_sc[...] * inv_full)              # lane-dense store


def _node_kernel(t_ref, h_ref, wa_ref, ba_ref, alpha_ref, out_ref):
    """Target-specific aggregation: a_linear(t)*alpha + h*(1-alpha)."""
    alpha = alpha_ref[0]                        # scalar from SMEM
    trans = jnp.dot(t_ref[...].astype(jnp.bfloat16), wa_ref[...],
                    preferred_element_type=jnp.float32) + ba_ref[...]
    out_ref[...] = trans * alpha + h_ref[...] * (jnp.float32(1.0) - alpha)


# ----------------------------------------------------------------------------
# Wrappers around pallas_call
# ----------------------------------------------------------------------------
def edge_message(h_src, h_dst, Wk, bk, Wq, bq, Wv, bv,
                 rel_att, rel_msg, pri, adj, *, n_heads, d_k,
                 dst_tile=512, src_tile=1024):
    """Messages t[dst, out_dim] for one canonical edge type."""
    n_src, in_dim = h_src.shape
    n_dst = h_dst.shape[0]
    out_dim = n_heads * d_k
    hp = jax.lax.Precision.HIGHEST

    # ---- fold relation transforms + pri/sqrt(dk) into projection weights (f32) ----
    Wk_f = jnp.einsum('ihd,hde->ihe', Wk.reshape(in_dim, n_heads, d_k),
                      rel_att, precision=hp).reshape(in_dim, out_dim)
    bk_f = jnp.einsum('hd,hde->he', bk.reshape(n_heads, d_k),
                      rel_att, precision=hp).reshape(out_dim)
    Wv_f = jnp.einsum('ihd,hde->ihe', Wv.reshape(in_dim, n_heads, d_k),
                      rel_msg, precision=hp).reshape(in_dim, out_dim)
    bv_f = jnp.einsum('hd,hde->he', bv.reshape(n_heads, d_k),
                      rel_msg, precision=hp).reshape(out_dim)
    scale = jnp.repeat(pri / math.sqrt(d_k), d_k)                     # (out_dim,)
    Wq_f = Wq * scale[None, :]
    bq_f = bq * scale

    # ---- hoist Q/K/V projections out of the (dst, src) grid: once per call (XLA) ----
    q = (jnp.dot(h_dst, Wq_f, precision=hp) + bq_f).astype(jnp.bfloat16)   # (Nd, D)
    k = (jnp.dot(h_src, Wk_f, precision=hp) + bk_f).astype(jnp.bfloat16)   # (Ns, D)
    v = jnp.dot(h_src, Wv_f, precision=hp) + bv_f                          # (Ns, D) f32
    # ones lane per head so sum(p) folds into the P·V matmul inside the kernel
    v_ext = jnp.concatenate(
        [v.reshape(n_src, n_heads, d_k),
         jnp.ones((n_src, n_heads, 1), jnp.float32)],
        axis=2).reshape(n_src, n_heads * (d_k + 1)).astype(jnp.bfloat16)

    # ---- tiling: dst rows ("parallel"), src rows streamed ("arbitrary") ----
    td = _pick_dst_tile(n_dst, dst_tile)
    ts = min(src_tile, _round_up(n_src, 128))
    nd_p = _round_up(n_dst, td)
    ns_p = _round_up(n_src, ts)
    # TODO(synk): pad adj / features once per graph outside the layer to avoid this
    #             per-call O(Nd*Ns) copy when the layer is stacked.
    q_p = jnp.pad(q, ((0, nd_p - n_dst), (0, 0)))
    k_p = jnp.pad(k, ((0, ns_p - n_src), (0, 0)))
    v_p = jnp.pad(v_ext, ((0, ns_p - n_src), (0, 0)))
    adj_p = jnp.pad(adj.astype(jnp.int8), ((0, nd_p - n_dst), (0, ns_p - n_src)))

    kernel = functools.partial(_edge_kernel, n_heads=n_heads, d_k=d_k)
    out = pl.pallas_call(
        kernel,
        out_shape=jax.ShapeDtypeStruct((nd_p, out_dim), jnp.float32),
        grid_spec=pltpu.PrefetchScalarGridSpec(
            num_scalar_prefetch=0,
            grid=(nd_p // td, ns_p // ts),
            in_specs=[
                pl.BlockSpec((td, out_dim), lambda d, s: (d, 0)),             # q bf16
                pl.BlockSpec((ts, out_dim), lambda d, s: (s, 0)),             # k bf16
                pl.BlockSpec((ts, n_heads * (d_k + 1)), lambda d, s: (s, 0)), # v(+1) bf16
                pl.BlockSpec((td, ts), lambda d, s: (d, s)),                  # adj int8
            ],
            out_specs=pl.BlockSpec((td, out_dim), lambda d, s: (d, 0)),
            scratch_shapes=[
                pltpu.VMEM((td, n_heads), jnp.float32),     # running max (heads on lanes)
                pltpu.VMEM((td, n_heads), jnp.float32),     # running denom
                pltpu.VMEM((td, out_dim), jnp.float32),     # accumulator
            ]),
        compiler_params=pltpu.CompilerParams(
            dimension_semantics=("parallel", "arbitrary")),
    )(q_p, k_p, v_p, adj_p)
    return out[:n_dst]


def node_update(t, h, Wa, ba, alpha, *, row_tile=512):
    n, out_dim = h.shape
    tr = min(row_tile, _round_up(n, 8))
    n_p = _round_up(n, tr)
    t_p = jnp.pad(t, ((0, n_p - n), (0, 0)))
    h_p = jnp.pad(h, ((0, n_p - n), (0, 0)))

    out = pl.pallas_call(
        _node_kernel,
        out_shape=jax.ShapeDtypeStruct((n_p, out_dim), jnp.float32),
        grid_spec=pltpu.PrefetchScalarGridSpec(
            num_scalar_prefetch=0,
            grid=(n_p // tr,),
            in_specs=[
                pl.BlockSpec((tr, out_dim), lambda i: (i, 0)),          # t
                pl.BlockSpec((tr, out_dim), lambda i: (i, 0)),          # h
                pl.BlockSpec((out_dim, out_dim), lambda i: (0, 0)),     # Wa (bf16)
                pl.BlockSpec((1, out_dim), lambda i: (0, 0)),           # ba
                pl.BlockSpec(memory_space=pltpu.MemorySpace.SMEM),      # alpha scalar
            ],
            out_specs=pl.BlockSpec((tr, out_dim), lambda i: (i, 0)),
        ),
        compiler_params=pltpu.CompilerParams(dimension_semantics=("parallel",)),
    )(t_p, h_p, Wa.astype(jnp.bfloat16), ba.reshape(1, -1),
      jnp.asarray(alpha, jnp.float32).reshape(1))
    return out[:n]


# ----------------------------------------------------------------------------
# HGTLayer forward (glue: loop over canonical edge types + cross-reducer mean)
# ----------------------------------------------------------------------------
def hgt_forward(h, adjs, params, node_dict, edge_dict, *, n_heads, d_k):
    agg = {nt: [] for nt in node_dict}
    for (src, et, dst), e_id in edge_dict.items():
        s_id, d_id = node_dict[src], node_dict[dst]
        msg = edge_message(
            h[src], h[dst],
            params['Wk'][s_id], params['bk'][s_id],
            params['Wq'][d_id], params['bq'][d_id],
            params['Wv'][s_id], params['bv'][s_id],
            params['rel_att'][e_id], params['rel_msg'][e_id],
            params['rel_pri'][e_id], adjs[(src, et, dst)],
            n_heads=n_heads, d_k=d_k)
        agg[dst].append(msg)

    new_h = {}
    for nt, n_id in node_dict.items():
        if not agg[nt]:                         # node type got no messages
            new_h[nt] = h[nt]
            continue
        t = sum(agg[nt]) / float(len(agg[nt]))  # cross_reducer='mean'
        alpha = jax.nn.sigmoid(params['skip'][n_id]).astype(jnp.float32)
        new_h[nt] = node_update(t, h[nt], params['Wa'][n_id], params['ba'][n_id], alpha)
    return new_h


# ----------------------------------------------------------------------------
# Pure-JAX reference (same math, no Pallas) for verification
# ----------------------------------------------------------------------------
def _edge_message_ref(h_src, h_dst, Wk, bk, Wq, bq, Wv, bv,
                      rel_att, rel_msg, pri, adj, n_heads, d_k):
    hp = jax.lax.Precision.HIGHEST
    k = (jnp.dot(h_src, Wk, precision=hp) + bk).reshape(-1, n_heads, d_k)
    v = (jnp.dot(h_src, Wv, precision=hp) + bv).reshape(-1, n_heads, d_k)
    q = (jnp.dot(h_dst, Wq, precision=hp) + bq).reshape(-1, n_heads, d_k)
    k = jnp.einsum('nhd,hde->nhe', k, rel_att, precision=hp)
    v = jnp.einsum('nhd,hde->nhe', v, rel_msg, precision=hp)
    s = jnp.einsum('dhe,she->dsh', q, k, precision=hp)
    s = s * (pri[None, None, :] / math.sqrt(d_k))
    mask = (adj > 0.5)[:, :, None]
    s_m = jnp.where(mask, s, -1e30)
    row_max = jnp.max(s_m, axis=1, keepdims=True)
    p = jnp.where(mask, jnp.exp(s_m - row_max), 0.0)
    denom = jnp.sum(p, axis=1, keepdims=True)
    attn = p / jnp.maximum(denom, 1e-9)
    out = jnp.einsum('dsh,she->dhe', attn, v, precision=hp)
    return out.reshape(-1, n_heads * d_k)


def hgt_forward_ref(h, adjs, params, node_dict, edge_dict, *, n_heads, d_k):
    hp = jax.lax.Precision.HIGHEST
    agg = {nt: [] for nt in node_dict}
    for (src, et, dst), e_id in edge_dict.items():
        s_id, d_id = node_dict[src], node_dict[dst]
        agg[dst].append(_edge_message_ref(
            h[src], h[dst],
            params['Wk'][s_id], params['bk'][s_id],
            params['Wq'][d_id], params['bq'][d_id],
            params['Wv'][s_id], params['bv'][s_id],
            params['rel_att'][e_id], params['rel_msg'][e_id],
            params['rel_pri'][e_id], adjs[(src, et, dst)], n_heads, d_k))
    new_h = {}
    for nt, n_id in node_dict.items():
        if not agg[nt]:
            new_h[nt] = h[nt]
            continue
        t = sum(agg[nt]) / float(len(agg[nt]))
        alpha = jax.nn.sigmoid(params['skip'][n_id])
        trans = jnp.dot(t, params['Wa'][n_id], precision=hp) + params['ba'][n_id]
        new_h[nt] = trans * alpha + h[nt] * (1.0 - alpha)
    return new_h


# ----------------------------------------------------------------------------
# Main
# ----------------------------------------------------------------------------
if __name__ == "__main__":
    # Small synthetic heterogeneous graph
    in_dim = 32
    out_dim = 32
    n_heads = 4
    d_k = out_dim // n_heads
    node_dict = {'a': 0, 'b': 1}
    edge_dict = {('a', 'ab', 'b'): 0, ('b', 'ba', 'a'): 1, ('a', 'aa', 'a'): 2}
    num_types = len(node_dict)
    num_relations = len(edge_dict)
    n_nodes = {'a': 8, 'b': 8}

    key = jax.random.PRNGKey(0)
    ks = jax.random.split(key, 16)

    # Node features
    h = {
        'a': jax.random.normal(ks[0], (n_nodes['a'], in_dim), jnp.float32),
        'b': jax.random.normal(ks[1], (n_nodes['b'], in_dim), jnp.float32),
    }

    # Dense adjacency masks adj[dst, src] per canonical edge type
    adjs = {}
    for i, (src, et, dst) in enumerate(edge_dict):
        adjs[(src, et, dst)] = jax.random.bernoulli(
            ks[2 + i], 0.5, (n_nodes[dst], n_nodes[src])).astype(jnp.float32)

    # Parameters (deterministic synthetic init; shapes match the PyTorch module,
    # linear weights stored pre-transposed as (in_dim, out_dim))
    def _lin_stack(k, n, din, dout, scale=0.1):
        return scale * jax.random.normal(k, (n, din, dout), jnp.float32)

    xav = math.sqrt(6.0 / (d_k + d_k))
    params = {
        'Wk': _lin_stack(ks[6], num_types, in_dim, out_dim),
        'bk': 0.05 * jax.random.normal(ks[7], (num_types, out_dim), jnp.float32),
        'Wq': _lin_stack(ks[8], num_types, in_dim, out_dim),
        'bq': 0.05 * jax.random.normal(ks[9], (num_types, out_dim), jnp.float32),
        'Wv': _lin_stack(ks[10], num_types, in_dim, out_dim),
        'bv': 0.05 * jax.random.normal(ks[11], (num_types, out_dim), jnp.float32),
        'Wa': _lin_stack(ks[12], num_types, out_dim, out_dim),
        'ba': 0.05 * jax.random.normal(ks[13], (num_types, out_dim), jnp.float32),
        'rel_att': jax.random.uniform(ks[14], (num_relations, n_heads, d_k, d_k),
                                      jnp.float32, -xav, xav),
        'rel_msg': jax.random.uniform(ks[15], (num_relations, n_heads, d_k, d_k),
                                      jnp.float32, -xav, xav),
        'rel_pri': jnp.ones((num_relations, n_heads), jnp.float32),
        'skip': jnp.ones((num_types,), jnp.float32),
    }

    out = hgt_forward(h, adjs, params, node_dict, edge_dict, n_heads=n_heads, d_k=d_k)
    out = {k_: jax.block_until_ready(v) for k_, v in out.items()}

    ref = hgt_forward_ref(h, adjs, params, node_dict, edge_dict, n_heads=n_heads, d_k=d_k)
    for nt in node_dict:
        assert out[nt].shape == (n_nodes[nt], out_dim)
        assert jnp.allclose(out[nt], ref[nt], atol=2e-2, rtol=2e-2), \
            f"mismatch for node type {nt}"

    print("KERNEL_OK")
</pallas_src>

<mosaic_0001>
module attributes {stable_mosaic.version = 11 : i64} {
  func.func @_edge_kernel(%arg0: i32, %arg1: i32, %arg2: memref<32x32xbf16, #tpu.memory_space<vmem>>, %arg3: memref<128x32xbf16, #tpu.memory_space<vmem>>, %arg4: memref<128x36xbf16, #tpu.memory_space<vmem>>, %arg5: memref<32x128xi8, #tpu.memory_space<vmem>>, %arg6: memref<32x32xf32, #tpu.memory_space<vmem>>, %arg7: memref<32x4xf32, #tpu.memory_space<vmem>>, %arg8: memref<32x4xf32, #tpu.memory_space<vmem>>, %arg9: memref<32x32xf32, #tpu.memory_space<vmem>>) attributes {dimension_semantics = [#tpu.dimension_semantics<parallel>, #tpu.dimension_semantics<arbitrary>], iteration_bounds = array<i64: 1, 1>, scalar_prefetch = 0 : i64, scratch_operands = 3 : i64, tpu.core_type = #tpu.core_type<tc>, window_params = [{transform_indices = @transform_0, window_bounds = array<i64: 32, 32>}, {transform_indices = @transform_1, window_bounds = array<i64: 128, 32>}, {transform_indices = @transform_2, window_bounds = array<i64: 128, 36>}, {transform_indices = @transform_3, window_bounds = array<i64: 32, 128>}, {transform_indices = @transform_4, window_bounds = array<i64: 32, 32>}]} {
    %c0_i32 = arith.constant 0 : i32
    %0 = arith.cmpi eq, %arg1, %c0_i32 : i32
    %1 = arith.extui %0 : i1 to i32
    %c0_i32_0 = arith.constant 0 : i32
    %2 = arith.cmpi ne, %1, %c0_i32_0 : i32
    scf.if %2 {
      %cst_35 = arith.constant 0xFF800000 : f32
      %119 = vector.broadcast %cst_35 : f32 to vector<32x4xf32>
      %c0_36 = arith.constant 0 : index
      %c0_37 = arith.constant 0 : index
      %120 = vector.load %arg7[%c0_36, %c0_37] : memref<32x4xf32, #tpu.memory_space<vmem>>, vector<32x4xf32>
      tpu.vector_store %arg7[%c0_36, %c0_37], %119 {strides = array<i32>} : memref<32x4xf32, #tpu.memory_space<vmem>>, vector<32x4xf32>,
      %cst_38 = arith.constant 0.000000e+00 : f32
      %121 = vector.broadcast %cst_38 : f32 to vector<32x4xf32>
      %c0_39 = arith.constant 0 : index
      %c0_40 = arith.constant 0 : index
      %122 = vector.load %arg8[%c0_39, %c0_40] : memref<32x4xf32, #tpu.memory_space<vmem>>, vector<32x4xf32>
      tpu.vector_store %arg8[%c0_39, %c0_40], %121 {strides = array<i32>} : memref<32x4xf32, #tpu.memory_space<vmem>>, vector<32x4xf32>,
      %cst_41 = arith.constant 0.000000e+00 : f32
      %123 = vector.broadcast %cst_41 : f32 to vector<32x32xf32>
      %c0_42 = arith.constant 0 : index
      %c0_43 = arith.constant 0 : index
      %124 = vector.load %arg9[%c0_42, %c0_43] : memref<32x32xf32, #tpu.memory_space<vmem>>, vector<32x32xf32>
      tpu.vector_store %arg9[%c0_42, %c0_43], %123 {strides = array<i32>} : memref<32x32xf32, #tpu.memory_space<vmem>>, vector<32x32xf32>,
    } else {
    }
    %c0 = arith.constant 0 : index
    %c0_1 = arith.constant 0 : index
    %3 = vector.load %arg2[%c0, %c0_1] : memref<32x32xbf16, #tpu.memory_space<vmem>>, vector<32x32xbf16>
    %c0_2 = arith.constant 0 : index
    %c0_3 = arith.constant 0 : index
    %4 = vector.load %arg3[%c0_2, %c0_3] : memref<128x32xbf16, #tpu.memory_space<vmem>>, vector<128x32xbf16>
    %c0_4 = arith.constant 0 : index
    %c0_5 = arith.constant 0 : index
    %5 = vector.load %arg4[%c0_4, %c0_5] : memref<128x36xbf16, #tpu.memory_space<vmem>>, vector<128x36xbf16>
    %c0_6 = arith.constant 0 : index
    %c0_7 = arith.constant 0 : index
    %6 = vector.load %arg5[%c0_6, %c0_7] : memref<32x128xi8, #tpu.memory_space<vmem>>, vector<32x128xi8>
    %7 = arith.sitofp %6 : vector<32x128xi8> to vector<32x128xf32>
    %cst = arith.constant 1.000000e+00 : f32
    %8 = vector.broadcast %cst : f32 to vector<32x128xf32>
    %9 = arith.subf %7, %8 : vector<32x128xf32>
    %cst_8 = arith.constant 1.000000e+30 : f32
    %10 = vector.broadcast %cst_8 : f32 to vector<32x128xf32>
    %11 = arith.mulf %9, %10 : vector<32x128xf32>
    %c0_9 = arith.constant 0 : index
    %c0_10 = arith.constant 0 : index
    %12 = vector.load %arg7[%c0_9, %c0_10] : memref<32x4xf32, #tpu.memory_space<vmem>>, vector<32x4xf32>
    %c0_11 = arith.constant 0 : index
    %c0_12 = arith.constant 0 : index
    %13 = vector.load %arg8[%c0_11, %c0_12] : memref<32x4xf32, #tpu.memory_space<vmem>>, vector<32x4xf32>
    %14 = vector.extract_strided_slice %3 {offsets = [0, 0], sizes = [32, 8], strides = [1, 1]} : vector<32x32xbf16> to vector<32x8xbf16>
    %15 = vector.extract_strided_slice %4 {offsets = [0, 0], sizes = [128, 8], strides = [1, 1]} : vector<128x32xbf16> to vector<128x8xbf16>
    %16 = vector.extract_strided_slice %5 {offsets = [0, 0], sizes = [128, 9], strides = [1, 1]} : vector<128x36xbf16> to vector<128x9xbf16>
    %cst_13 = arith.constant dense<0.000000e+00> : vector<32x128xf32>
    %17 = tpu.matmul %14, %15, %cst_13 {dimension_numbers = #tpu.dot_dimension_numbers<[1], [1], [0], [0], [0, 0, 1, 0], [], []>} : vector<32x8xbf16>, vector<128x8xbf16>, vector<32x128xf32> -> vector<32x128xf32>
    %18 = arith.addf %17, %11 : vector<32x128xf32>
    %19 = vector.extract_strided_slice %12 {offsets = [0, 0], sizes = [32, 1], strides = [1, 1]} : vector<32x4xf32> to vector<32x1xf32>
    %cst_14 = arith.constant dense<0xFF800000> : vector<32xf32>
    %20 = vector.multi_reduction <maximumf>, %18, %cst_14 [1] : vector<32x128xf32> to vector<32xf32>
    %21 = vector.shape_cast %20 : vector<32xf32> to vector<32x1xf32>
    %22 = arith.maximumf %19, %21 : vector<32x1xf32>
    %23 = arith.subf %19, %22 : vector<32x1xf32>
    %24 = math.exp %23 : vector<32x1xf32>
    %25 = vector.broadcast %22 : vector<32x1xf32> to vector<32x128xf32>
    %26 = arith.subf %18, %25 : vector<32x128xf32>
    %27 = math.exp %26 : vector<32x128xf32>
    %28 = arith.truncf %27 : vector<32x128xf32> to vector<32x128xbf16>
    %cst_15 = arith.constant dense<0.000000e+00> : vector<32x9xf32>
    %29 = tpu.matmul %28, %16, %cst_15 {dimension_numbers = #tpu.dot_dimension_numbers<[1], [0], [0], [1], [0, 0, 1, 1], [], []>} : vector<32x128xbf16>, vector<128x9xbf16>, vector<32x9xf32> -> vector<32x9xf32>
    %30 = vector.extract_strided_slice %13 {offsets = [0, 0], sizes = [32, 1], strides = [1, 1]} : vector<32x4xf32> to vector<32x1xf32>
    %31 = arith.mulf %24, %30 : vector<32x1xf32>
    %32 = vector.extract_strided_slice %29 {offsets = [0, 8], sizes = [32, 1], strides = [1, 1]} : vector<32x9xf32> to vector<32x1xf32>
    %33 = arith.addf %31, %32 : vector<32x1xf32>
    %34 = vector.extract_strided_slice %29 {offsets = [0, 0], sizes = [32, 8], strides = [1, 1]} : vector<32x9xf32> to vector<32x8xf32>
    %35 = vector.extract_strided_slice %3 {offsets = [0, 8], sizes = [32, 8], strides = [1, 1]} : vector<32x32xbf16> to vector<32x8xbf16>
    %36 = vector.extract_strided_slice %4 {offsets = [0, 8], sizes = [128, 8], strides = [1, 1]} : vector<128x32xbf16> to vector<128x8xbf16>
    %37 = vector.extract_strided_slice %5 {offsets = [0, 9], sizes = [128, 9], strides = [1, 1]} : vector<128x36xbf16> to vector<128x9xbf16>
    %cst_16 = arith.constant dense<0.000000e+00> : vector<32x128xf32>
    %38 = tpu.matmul %35, %36, %cst_16 {dimension_numbers = #tpu.dot_dimension_numbers<[1], [1], [0], [0], [0, 0, 1, 0], [], []>} : vector<32x8xbf16>, vector<128x8xbf16>, vector<32x128xf32> -> vector<32x128xf32>
    %39 = arith.addf %38, %11 : vector<32x128xf32>
    %40 = vector.extract_strided_slice %12 {offsets = [0, 1], sizes = [32, 1], strides = [1, 1]} : vector<32x4xf32> to vector<32x1xf32>
    %cst_17 = arith.constant dense<0xFF800000> : vector<32xf32>
    %41 = vector.multi_reduction <maximumf>, %39, %cst_17 [1] : vector<32x128xf32> to vector<32xf32>
    %42 = vector.shape_cast %41 : vector<32xf32> to vector<32x1xf32>
    %43 = arith.maximumf %40, %42 : vector<32x1xf32>
    %44 = arith.subf %40, %43 : vector<32x1xf32>
    %45 = math.exp %44 : vector<32x1xf32>
    %46 = vector.broadcast %43 : vector<32x1xf32> to vector<32x128xf32>
    %47 = arith.subf %39, %46 : vector<32x128xf32>
    %48 = math.exp %47 : vector<32x128xf32>
    %49 = arith.truncf %48 : vector<32x128xf32> to vector<32x128xbf16>
    %cst_18 = arith.constant dense<0.000000e+00> : vector<32x9xf32>
    %50 = tpu.matmul %49, %37, %cst_18 {dimension_numbers = #tpu.dot_dimension_numbers<[1], [0], [0], [1], [0, 0, 1, 1], [], []>} : vector<32x128xbf16>, vector<128x9xbf16>, vector<32x9xf32> -> vector<32x9xf32>
    %51 = vector.extract_strided_slice %13 {offsets = [0, 1], sizes = [32, 1], strides = [1, 1]} : vector<32x4xf32> to vector<32x1xf32>
    %52 = arith.mulf %45, %51 : vector<32x1xf32>
    %53 = vector.extract_strided_slice %50 {offsets = [0, 8], sizes = [32, 1], strides = [1, 1]} : vector<32x9xf32> to vector<32x1xf32>
    %54 = arith.addf %52, %53 : vector<32x1xf32>
    %55 = vector.extract_strided_slice %50 {offsets = [0, 0], sizes = [32, 8], strides = [1, 1]} : vector<32x9xf32> to vector<32x8xf32>
    %56 = vector.extract_strided_slice %3 {offsets = [0, 16], sizes = [32, 8], strides = [1, 1]} : vector<32x32xbf16> to vector<32x8xbf16>
    %57 = vector.extract_strided_slice %4 {offsets = [0, 16], sizes = [128, 8], strides = [1, 1]} : vector<128x32xbf16> to vector<128x8xbf16>
    %58 = vector.extract_strided_slice %5 {offsets = [0, 18], sizes = [128, 9], strides = [1, 1]} : vector<128x36xbf16> to vector<128x9xbf16>
    %cst_19 = arith.constant dense<0.000000e+00> : vector<32x128xf32>
    %59 = tpu.matmul %56, %57, %cst_19 {dimension_numbers = #tpu.dot_dimension_numbers<[1], [1], [0], [0], [0, 0, 1, 0], [], []>} : vector<32x8xbf16>, vector<128x8xbf16>, vector<32x128xf32> -> vector<32x128xf32>
    %60 = arith.addf %59, %11 : vector<32x128xf32>
    %61 = vector.extract_strided_slice %12 {offsets = [0, 2], sizes = [32, 1], strides = [1, 1]} : vector<32x4xf32> to vector<32x1xf32>
    %cst_20 = arith.constant dense<0xFF800000> : vector<32xf32>
    %62 = vector.multi_reduction <maximumf>, %60, %cst_20 [1] : vector<32x128xf32> to vector<32xf32>
    %63 = vector.shape_cast %62 : vector<32xf32> to vector<32x1xf32>
    %64 = arith.maximumf %61, %63 : vector<32x1xf32>
    %65 = arith.subf %61, %64 : vector<32x1xf32>
    %66 = math.exp %65 : vector<32x1xf32>
    %67 = vector.broadcast %64 : vector<32x1xf32> to vector<32x128xf32>
    %68 = arith.subf %60, %67 : vector<32x128xf32>
    %69 = math.exp %68 : vector<32x128xf32>
    %70 = arith.truncf %69 : vector<32x128xf32> to vector<32x128xbf16>
    %cst_21 = arith.constant dense<0.000000e+00> : vector<32x9xf32>
    %71 = tpu.matmul %70, %58, %cst_21 {dimension_numbers = #tpu.dot_dimension_numbers<[1], [0], [0], [1], [0, 0, 1, 1], [], []>} : vector<32x128xbf16>, vector<128x9xbf16>, vector<32x9xf32> -> vector<32x9xf32>
    %72 = vector.extract_strided_slice %13 {offsets = [0, 2], sizes = [32, 1], strides = [1, 1]} : vector<32x4xf32> to vector<32x1xf32>
    %73 = arith.mulf %66, %72 : vector<32x1xf32>
    %74 = vector.extract_strided_slice %71 {offsets = [0, 8], sizes = [32, 1], strides = [1, 1]} : vector<32x9xf32> to vector<32x1xf32>
    %75 = arith.addf %73, %74 : vector<32x1xf32>
    %76 = vector.extract_strided_slice %71 {offsets = [0, 0], sizes = [32, 8], strides = [1, 1]} : vector<32x9xf32> to vector<32x8xf32>
    %77 = vector.extract_strided_slice %3 {offsets = [0, 24], sizes = [32, 8], strides = [1, 1]} : vector<32x32xbf16> to vector<32x8xbf16>
    %78 = vector.extract_strided_slice %4 {offsets = [0, 24], sizes = [128, 8], strides = [1, 1]} : vector<128x32xbf16> to vector<128x8xbf16>
    %79 = vector.extract_strided_slice %5 {offsets = [0, 27], sizes = [128, 9], strides = [1, 1]} : vector<128x36xbf16> to vector<128x9xbf16>
    %cst_22 = arith.constant dense<0.000000e+00> : vector<32x128xf32>
    %80 = tpu.matmul %77, %78, %cst_22 {dimension_numbers = #tpu.dot_dimension_numbers<[1], [1], [0], [0], [0, 0, 1, 0], [], []>} : vector<32x8xbf16>, vector<128x8xbf16>, vector<32x128xf32> -> vector<32x128xf32>
    %81 = arith.addf %80, %11 : vector<32x128xf32>
    %82 = vector.extract_strided_slice %12 {offsets = [0, 3], sizes = [32, 1], strides = [1, 1]} : vector<32x4xf32> to vector<32x1xf32>
    %cst_23 = arith.constant dense<0xFF800000> : vector<32xf32>
    %83 = vector.multi_reduction <maximumf>, %81, %cst_23 [1] : vector<32x128xf32> to vector<32xf32>
    %84 = vector.shape_cast %83 : vector<32xf32> to vector<32x1xf32>
    %85 = arith.maximumf %82, %84 : vector<32x1xf32>
    %86 = arith.subf %82, %85 : vector<32x1xf32>
    %87 = math.exp %86 : vector<32x1xf32>
    %88 = vector.broadcast %85 : vector<32x1xf32> to vector<32x128xf32>
    %89 = arith.subf %81, %88 : vector<32x128xf32>
    %90 = math.exp %89 : vector<32x128xf32>
    %91 = arith.truncf %90 : vector<32x128xf32> to vector<32x128xbf16>
    %cst_24 = arith.constant dense<0.000000e+00> : vector<32x9xf32>
    %92 = tpu.matmul %91, %79, %cst_24 {dimension_numbers = #tpu.dot_dimension_numbers<[1], [0], [0], [1], [0, 0, 1, 1], [], []>} : vector<32x128xbf16>, vector<128x9xbf16>, vector<32x9xf32> -> vector<32x9xf32>
    %93 = vector.extract_strided_slice %13 {offsets = [0, 3], sizes = [32, 1], strides = [1, 1]} : vector<32x4xf32> to vector<32x1xf32>
    %94 = arith.mulf %87, %93 : vector<32x1xf32>
    %95 = vector.extract_strided_slice %92 {offsets = [0, 8], sizes = [32, 1], strides = [1, 1]} : vector<32x9xf32> to vector<32x1xf32>
    %96 = arith.addf %94, %95 : vector<32x1xf32>
    %97 = vector.extract_strided_slice %92 {offsets = [0, 0], sizes = [32, 8], strides = [1, 1]} : vector<32x9xf32> to vector<32x8xf32>
    %98 = tpu.concatenate %22, %43, %64, %85 in 1 : vector<32x1xf32>, vector<32x1xf32>, vector<32x1xf32>, vector<32x1xf32> -> vector<32x4xf32>
    %c0_25 = arith.constant 0 : index
    %c0_26 = arith.constant 0 : index
    %99 = vector.load %arg7[%c0_25, %c0_26] : memref<32x4xf32, #tpu.memory_space<vmem>>, vector<32x4xf32>
    tpu.vector_store %arg7[%c0_25, %c0_26], %98 {strides = array<i32>} : memref<32x4xf32, #tpu.memory_space<vmem>>, vector<32x4xf32>,
    %100 = tpu.concatenate %33, %54, %75, %96 in 1 : vector<32x1xf32>, vector<32x1xf32>, vector<32x1xf32>, vector<32x1xf32> -> vector<32x4xf32>
    %c0_27 = arith.constant 0 : index
    %c0_28 = arith.constant 0 : index
    %101 = vector.load %arg8[%c0_27, %c0_28] : memref<32x4xf32, #tpu.memory_space<vmem>>, vector<32x4xf32>
    tpu.vector_store %arg8[%c0_27, %c0_28], %100 {strides = array<i32>} : memref<32x4xf32, #tpu.memory_space<vmem>>, vector<32x4xf32>,
    %102 = vector.shape_cast %24 : vector<32x1xf32> to vector<32x1xf32>
    %103 = vector.broadcast %102 : vector<32x1xf32> to vector<32x8xf32>
    %104 = vector.shape_cast %45 : vector<32x1xf32> to vector<32x1xf32>
    %105 = vector.broadcast %104 : vector<32x1xf32> to vector<32x8xf32>
    %106 = vector.shape_cast %66 : vector<32x1xf32> to vector<32x1xf32>
    %107 = vector.broadcast %106 : vector<32x1xf32> to vector<32x8xf32>
    %108 = vector.shape_cast %87 : vector<32x1xf32> to vector<32x1xf32>
    %109 = vector.broadcast %108 : vector<32x1xf32> to vector<32x8xf32>
    %110 = tpu.concatenate %103, %105, %107, %109 in 1 : vector<32x8xf32>, vector<32x8xf32>, vector<32x8xf32>, vector<32x8xf32> -> vector<32x32xf32>
    %111 = tpu.concatenate %34, %55, %76, %97 in 1 : vector<32x8xf32>, vector<32x8xf32>, vector<32x8xf32>, vector<32x8xf32> -> vector<32x32xf32>
    %c0_29 = arith.constant 0 : index
    %c0_30 = arith.constant 0 : index
    %112 = vector.load %arg9[%c0_29, %c0_30] : memref<32x32xf32, #tpu.memory_space<vmem>>, vector<32x32xf32>
    %113 = arith.mulf %110, %112 : vector<32x32xf32>
    %114 = arith.addf %113, %111 : vector<32x32xf32>
    %c0_31 = arith.constant 0 : index
    %c0_32 = arith.constant 0 : index
    %115 = vector.load %arg9[%c0_31, %c0_32] : memref<32x32xf32, #tpu.memory_space<vmem>>, vector<32x32xf32>
    tpu.vector_store %arg9[%c0_31, %c0_32], %114 {strides = array<i32>} : memref<32x32xf32, #tpu.memory_space<vmem>>, vector<32x32xf32>,
    %c0_i32_33 = arith.constant 0 : i32
    %116 = arith.cmpi eq, %arg1, %c0_i32_33 : i32
    %117 = arith.extui %116 : i1 to i32
    %c0_i32_34 = arith.constant 0 : i32
    %118 = arith.cmpi ne, %117, %c0_i32_34 : i32
    scf.if %118 {
      %c0_35 = arith.constant 0 : index
      %c0_36 = arith.constant 0 : index
      %119 = vector.load %arg8[%c0_35, %c0_36] : memref<32x4xf32, #tpu.memory_space<vmem>>, vector<32x4xf32>
      %cst_37 = arith.constant 9.99999971E-10 : f32
      %120 = vector.broadcast %cst_37 : f32 to vector<32x4xf32>
      %121 = arith.maximumf %119, %120 : vector<32x4xf32>
      %122 = tpu.reciprocal %121 {approx = true} : vector<32x4xf32> -> vector<32x4xf32>
      %123 = vector.extract_strided_slice %122 {offsets = [0, 0], sizes = [32, 1], strides = [1, 1]} : vector<32x4xf32> to vector<32x1xf32>
      %124 = vector.shape_cast %123 : vector<32x1xf32> to vector<32x1xf32>
      %125 = vector.broadcast %124 : vector<32x1xf32> to vector<32x8xf32>
      %126 = vector.extract_strided_slice %122 {offsets = [0, 1], sizes = [32, 1], strides = [1, 1]} : vector<32x4xf32> to vector<32x1xf32>
      %127 = vector.shape_cast %126 : vector<32x1xf32> to vector<32x1xf32>
      %128 = vector.broadcast %127 : vector<32x1xf32> to vector<32x8xf32>
      %129 = vector.extract_strided_slice %122 {offsets = [0, 2], sizes = [32, 1], strides = [1, 1]} : vector<32x4xf32> to vector<32x1xf32>
      %130 = vector.shape_cast %129 : vector<32x1xf32> to vector<32x1xf32>
      %131 = vector.broadcast %130 : vector<32x1xf32> to vector<32x8xf32>
      %132 = vector.extract_strided_slice %122 {offsets = [0, 3], sizes = [32, 1], strides = [1, 1]} : vector<32x4xf32> to vector<32x1xf32>
      %133 = vector.shape_cast %132 : vector<32x1xf32> to vector<32x1xf32>
      %134 = vector.broadcast %133 : vector<32x1xf32> to vector<32x8xf32>
      %135 = tpu.concatenate %125, %128, %131, %134 in 1 : vector<32x8xf32>, vector<32x8xf32>, vector<32x8xf32>, vector<32x8xf32> -> vector<32x32xf32>
      %c0_38 = arith.constant 0 : index
      %c0_39 = arith.constant 0 : index
      %136 = vector.load %arg7[%c0_38, %c0_39] : memref<32x4xf32, #tpu.memory_space<vmem>>, vector<32x1xf32>
      %cst_40 = arith.constant -9.99999956E+24 : f32
      %137 = vector.broadcast %cst_40 : f32 to vector<32x1xf32>
      %138 = arith.cmpf olt, %136, %137 : vector<32x1xf32>
      %c0_41 = arith.constant 0 : index
      %c0_42 = arith.constant 0 : index
      %139 = vector.load %arg9[%c0_41, %c0_42] : memref<32x32xf32, #tpu.memory_space<vmem>>, vector<32x32xf32>
      %140 = arith.mulf %139, %135 : vector<32x32xf32>
      %cst_43 = arith.constant 0.000000e+00 : f32
      %141 = vector.shape_cast %138 : vector<32x1xi1> to vector<32x1xi1>
      %142 = vector.broadcast %141 : vector<32x1xi1> to vector<32x32xi1>
      %143 = vector.broadcast %cst_43 : f32 to vector<32x32xf32>
      %144 = arith.select %142, %143, %140 : vector<32x32xi1>, vector<32x32xf32>
      %c0_44 = arith.constant 0 : index
      %c0_45 = arith.constant 0 : index
      %145 = vector.load %arg6[%c0_44, %c0_45] : memref<32x32xf32, #tpu.memory_space<vmem>>, vector<32x32xf32>
      tpu.vector_store %arg6[%c0_44, %c0_45], %144 {strides = array<i32>} : memref<32x32xf32, #tpu.memory_space<vmem>>, vector<32x32xf32>,
    } else {
    }
    return
  }
  func.func @transform_0(%arg0: i32, %arg1: i32) -> (i32, i32) {
    %c0_i32 = arith.constant 0 : i32
    %c0_i32_0 = arith.constant 0 : i32
    return %arg0, %c0_i32 : i32, i32
  }
  func.func @transform_1(%arg0: i32, %arg1: i32) -> (i32, i32) {
    %c0_i32 = arith.constant 0 : i32
    %c0_i32_0 = arith.constant 0 : i32
    return %arg1, %c0_i32 : i32, i32
  }
  func.func @transform_2(%arg0: i32, %arg1: i32) -> (i32, i32) {
    %c0_i32 = arith.constant 0 : i32
    %c0_i32_0 = arith.constant 0 : i32
    return %arg1, %c0_i32 : i32, i32
  }
  func.func @transform_3(%arg0: i32, %arg1: i32) -> (i32, i32) {
    %c0_i32 = arith.constant 0 : i32
    return %arg0, %arg1 : i32, i32
  }
  func.func @transform_4(%arg0: i32, %arg1: i32) -> (i32, i32) {
    %c0_i32 = arith.constant 0 : i32
    %c0_i32_0 = arith.constant 0 : i32
    return %arg0, %c0_i32 : i32, i32
  }
}

</mosaic_0001>

<llo_original>
// kernel: tpu_custom_call.1
$region0: #{tpu_custom_call.1}
  #allocation0 [shape = 'u32[]', space=smem, size = 0x4, offset = 0x4, fixed_abs, tag = 'smem constant byte address 0x4 - core index']
  #allocation1 [shape = 'u32[72,128]{1,0:T(1,128)}', space=vmem, size = 0x9000, scoped, tag = 'internal scratch']
  #allocation2 [shape = 'f32[32,4]{1,0:T(8,128)}', space=vmem, size = 0x4000, scoped, tag = 'scratch operand']
  #allocation3 [shape = 'f32[32,4]{1,0:T(8,128)}', space=vmem, size = 0x4000, scoped, tag = 'scratch operand']
  #allocation4 [shape = 'f32[32,32]{1,0:T(8,128)}', space=vmem, size = 0x4000, scoped, tag = 'scratch operand']
  %s0 = inlined_call_operand.vmem [shape: bf16[32,32], index: 0, kind: input, shape index: {}]
  %s1 = inlined_call_operand.vmem [shape: bf16[128,32], index: 1, kind: input, shape index: {}]
  %s2 = inlined_call_operand.vmem [shape: bf16[128,36], index: 2, kind: input, shape index: {}]
  %s3 = inlined_call_operand.vmem [shape: s8[32,128], index: 3, kind: input, shape index: {}]
  %s4 = inlined_call_operand.hbm [shape: f32[32,32], index: 4, kind: output, shape index: {}]
  %s5 = sld [smem:[#allocation0]]
  $region34: #{tpu_custom_call.1} parent=0
    _
  %s7 = ssub.s32 1, %s5
  %s8 = scalar_select 0, %s7, %s5
  $region1: #{tpu_custom_call.1} parent=0
    #allocation5 [shape = 'u8[16384]{0}', space=vmem, size = 0x4000, scoped, tag = 'output window, operand 0, single buffered']
    #allocation6 [shape = 's32[1]{0}', space=sflag, size = 0x4, scoped, tag = 'scoped memory for tpu_custom_call.1']
    %9 = vsyncpa [#allocation6], 0
    // Predicated region
    $region2: #{tpu_custom_call.1} parent=1 // pred_check
      _
    $region3: #{tpu_custom_call.1} parent=1 // pred_check_branch
      %11 = sbr.rel (0) target = $region5
    $region4: #{tpu_custom_call.1} parent=1 // pred_region
      _
    $region5: #{tpu_custom_call.1} parent=1 // pred_fallthru
      _
    // Predicated region
    $region6: #{tpu_custom_call.1} parent=1 // pred_check
      _
    $region7: #{tpu_custom_call.1} parent=1 // pred_check_branch
      %13 = sbr.rel (0) target = $region9
    $region8: #{tpu_custom_call.1} parent=1 // pred_region
      _
    $region9: #{tpu_custom_call.1} parent=1 // pred_fallthru
      _
    // Predicated region
    $region10: #{tpu_custom_call.1} parent=1 // pred_check
      _
    $region11: #{tpu_custom_call.1} parent=1 // pred_check_branch
      %15 = sbr.rel (0) target = $region13
    $region12: #{tpu_custom_call.1} parent=1 // pred_region
      _
    $region13: #{tpu_custom_call.1} parent=1 // pred_fallthru
      _
    // Predicated region
    $region14: #{tpu_custom_call.1} parent=1 // pred_check
      _
    $region15: #{tpu_custom_call.1} parent=1 // pred_check_branch
      %17 = sbr.rel (0) target = $region17
    $region16: #{tpu_custom_call.1} parent=1 // pred_region
      _
    $region17: #{tpu_custom_call.1} parent=1 // pred_fallthru
      _
    %p18 = scmp.eq.s32.totalorder 0, 0
    // Predicated region
    $region18: #{tpu_custom_call.1} parent=1 // pred_check
      %p19 = pneg %p18
    $region19: #{tpu_custom_call.1} parent=1 // pred_check_branch
      %21 = sbr.rel (%p19) target = $region21
    $region20: #{tpu_custom_call.1} parent=1 // pred_region
      %vm22 = vcmask 31744
      %23 = vst.msk [vmem:[#allocation2] sm:$0xff] %vm22, -inf
      %24 = vst.msk [vmem:[#allocation2 + $0x8] sm:$0xff] %vm22, -inf
      %25 = vst.msk [vmem:[#allocation2 + $0x10] sm:$0xff] %vm22, -inf
      %26 = vst.msk [vmem:[#allocation2 + $0x18] sm:$0xff] %vm22, -inf
      %27 = vst.msk [vmem:[#allocation3] sm:$0xff] %vm22, 0.0
      %28 = vst.msk [vmem:[#allocation3 + $0x8] sm:$0xff] %vm22, 0.0
      %29 = vst.msk [vmem:[#allocation3 + $0x10] sm:$0xff] %vm22, 0.0
      %30 = vst.msk [vmem:[#allocation3 + $0x18] sm:$0xff] %vm22, 0.0
      %vm31 = vcmask 261120
      %32 = vst.msk [vmem:[#allocation4] sm:$0xff] %vm31, 0.0
      %33 = vst.msk [vmem:[#allocation4 + $0x8] sm:$0xff] %vm31, 0.0
      %34 = vst.msk [vmem:[#allocation4 + $0x10] sm:$0xff] %vm31, 0.0
      %35 = vst.msk [vmem:[#allocation4 + $0x18] sm:$0xff] %vm31, 0.0
    $region21: #{tpu_custom_call.1} parent=1 // pred_fallthru
      _
    %v36 = vld [vmem:[%s0] sm:$0xf]
    %v37 = vld [vmem:[%s0 + $0x4] sm:$0xf]
    %v38 = vld [vmem:[%s0 + $0x8] sm:$0xf]
    %v39 = vld [vmem:[%s0 + $0xc] sm:$0xf]
    %v40 = vld [vmem:[%s1] sm:$0xf]
    %v41 = vld [vmem:[%s1 + $0x4] sm:$0xf]
    %v42 = vld [vmem:[%s1 + $0x8] sm:$0xf]
    %v43 = vld [vmem:[%s1 + $0xc] sm:$0xf]
    %v44 = vld [vmem:[%s1 + $0x10] sm:$0xf]
    %v45 = vld [vmem:[%s1 + $0x14] sm:$0xf]
    %v46 = vld [vmem:[%s1 + $0x18] sm:$0xf]
    %v47 = vld [vmem:[%s1 + $0x1c] sm:$0xf]
    %v48 = vld [vmem:[%s1 + $0x20] sm:$0xf]
    %v49 = vld [vmem:[%s1 + $0x24] sm:$0xf]
    %v50 = vld [vmem:[%s1 + $0x28] sm:$0xf]
    %v51 = vld [vmem:[%s1 + $0x2c] sm:$0xf]
    %v52 = vld [vmem:[%s1 + $0x30] sm:$0xf]
    %v53 = vld [vmem:[%s1 + $0x34] sm:$0xf]
    %v54 = vld [vmem:[%s1 + $0x38] sm:$0xf]
    %v55 = vld [vmem:[%s1 + $0x3c] sm:$0xf]
    %v56 = vld [vmem:[%s2] sm:$0xf]
    %v57 = vld [vmem:[%s2 + $0x4] sm:$0xf]
    %v58 = vld [vmem:[%s2 + $0x8] sm:$0xf]
    %v59 = vld [vmem:[%s2 + $0xc] sm:$0xf]
    %v60 = vld [vmem:[%s2 + $0x10] sm:$0xf]
    %v61 = vld [vmem:[%s2 + $0x14] sm:$0xf]
    %v62 = vld [vmem:[%s2 + $0x18] sm:$0xf]
    %v63 = vld [vmem:[%s2 + $0x1c] sm:$0xf]
    %v64 = vld [vmem:[%s2 + $0x20] sm:$0xf]
    %v65 = vld [vmem:[%s2 + $0x24] sm:$0xf]
    %v66 = vld [vmem:[%s2 + $0x28] sm:$0xf]
    %v67 = vld [vmem:[%s2 + $0x2c] sm:$0xf]
    %v68 = vld [vmem:[%s2 + $0x30] sm:$0xf]
    %v69 = vld [vmem:[%s2 + $0x34] sm:$0xf]
    %v70 = vld [vmem:[%s2 + $0x38] sm:$0xf]
    %v71 = vld [vmem:[%s2 + $0x3c] sm:$0xf]
    %v72 = vld [vmem:[%s3] sm:$0xff]
    %v73 = vunpack.c.0.s8 %v72
    %v74 = vunpack.c.1.s8 %v72
    %v75 = vunpack.c.2.s8 %v72
    %v76 = vunpack.c.3.s8 %v72
    %v77 = vcvt.s32.f32 %v73
    %v78 = vcvt.s32.f32 %v74
    %v79 = vcvt.s32.f32 %v75
    %v80 = vcvt.s32.f32 %v76
    %v81 = vsub.f32 %v77, 1.0
    %v82 = vsub.f32 %v78, 1.0
    %v83 = vsub.f32 %v79, 1.0
    %v84 = vsub.f32 %v80, 1.0
    %v85 = vmul.f32 %v81, 1e+30
    %v86 = vmul.f32 %v82, 1e+30
    %v87 = vmul.f32 %v83, 1e+30
    %v88 = vmul.f32 %v84, 1e+30
    %v89 = vld [vmem:[#allocation2] sm:$0xff]
    %v90 = vld [vmem:[#allocation2 + $0x8] sm:$0xff]
    %v91 = vld [vmem:[#allocation2 + $0x10] sm:$0xff]
    %v92 = vld [vmem:[#allocation2 + $0x18] sm:$0xff]
    %v93 = vld [vmem:[#allocation3] sm:$0xff]
    %v94 = vld [vmem:[#allocation3 + $0x8] sm:$0xff]
    %v95 = vld [vmem:[#allocation3 + $0x10] sm:$0xff]
    %v96 = vld [vmem:[#allocation3 + $0x18] sm:$0xff]
    %v101 = vunpack.c.l.b16 %v36
    %v102 = vunpack.c.l.b16 %v37
    %v103 = vunpack.c.l.b16 %v38
    %v104 = vunpack.c.l.b16 %v39
    %v105 = vpack.c.b16 %v102, %v101
    %v106 = vpack.c.b16 %v104, %v103
    %v123 = vunpack.c.l.b16 %v40
    %v124 = vunpack.c.l.b16 %v41
    %v125 = vunpack.c.l.b16 %v42
    %v126 = vunpack.c.l.b16 %v43
    %v127 = vunpack.c.l.b16 %v44
    %v128 = vunpack.c.l.b16 %v45
    %v129 = vunpack.c.l.b16 %v46
    %v130 = vunpack.c.l.b16 %v47
    %v131 = vunpack.c.l.b16 %v48
    %v132 = vunpack.c.l.b16 %v49
    %v133 = vunpack.c.l.b16 %v50
    %v134 = vunpack.c.l.b16 %v51
    %v135 = vunpack.c.l.b16 %v52
    %v136 = vunpack.c.l.b16 %v53
    %v137 = vunpack.c.l.b16 %v54
    %v138 = vunpack.c.l.b16 %v55
    %v139 = vpack.c.b16 %v124, %v123
    %v140 = vpack.c.b16 %v126, %v125
    %v141 = vpack.c.b16 %v128, %v127
    %v142 = vpack.c.b16 %v130, %v129
    %v143 = vpack.c.b16 %v132, %v131
    %v144 = vpack.c.b16 %v134, %v133
    %v145 = vpack.c.b16 %v136, %v135
    %v146 = vpack.c.b16 %v138, %v137
    %vm147 = vcmask 64512
    %v149 = vsel %vm147, %v105, 0
    %v152 = vsel %vm147, %v106, 0
    %v155 = vsel %vm147, %v139, 0
    %v158 = vsel %vm147, %v140, 0
    %v161 = vsel %vm147, %v141, 0
    %v164 = vsel %vm147, %v142, 0
    %v167 = vsel %vm147, %v143, 0
    %v170 = vsel %vm147, %v144, 0
    %v173 = vsel %vm147, %v145, 0
    %v176 = vsel %vm147, %v146, 0
    %178 = vmatpush.bf16.xpose.msra.mxu0 %v176
    %179 = vmatpush.bf16.xpose.msra.mxu0 %v173
    %180 = vmatpush.bf16.xpose.msra.mxu0 %v170
    %181 = vmatpush.bf16.xpose.msra.mxu0 %v167
    %182 = vmatpush.bf16.xpose.msra.mxu0 %v164
    %183 = vmatpush.bf16.xpose.msra.mxu0 %v161
    %184 = vmatpush.bf16.xpose.msra.mxu0 %v158
    %185 = vmatpush.bf16.xpose.msra.mxu0 %v155
    %186 = vmatmul.bf16.gmra.mxu0 %v149
    %v187 = vpop.f32.mrf.mxu0
    %v188 = vadd.f32 %v85, %v187
    %v189 = vpop.f32.mrf.mxu0
    %v190 = vadd.f32 %v86, %v189
    %191 = vmatmul.bf16.gmra.mxu0 %v152
    %v192 = vpop.f32.mrf.mxu0
    %v193 = vadd.f32 %v87, %v192
    %v194 = vpop.f32.mrf.mxu0
    %v195 = vadd.f32 %v88, %v194
    %196 = vdwg.mxu0
    %197 = vmax.xlane.f32.xlu0 %v188
    %v198 = vpop.xlane.xlu0 %197
    %199 = vmax.xlane.f32.xlu0 %v190
    %v200 = vpop.xlane.xlu0 %199
    %201 = vmax.xlane.f32.xlu0 %v193
    %v202 = vpop.xlane.xlu0 %201
    %203 = vmax.xlane.f32.xlu0 %v195
    %v204 = vpop.xlane.xlu0 %203
    %v205 = vmax.f32 %v89, %v198
    %v206 = vmax.f32 %v90, %v200
    %v207 = vmax.f32 %v91, %v202
    %v208 = vmax.f32 %v92, %v204
    %v209 = vsub.f32 %v89, %v205
    %v210 = vsub.f32 %v90, %v206
    %v211 = vsub.f32 %v91, %v207
    %v212 = vsub.f32 %v92, %v208
    %v213 = vmul.f32 %v209, 1.442695
    %v214 = vpow.pop %v213
    %v215 = vmul.f32 %v210, 1.442695
    %v216 = vpow.pop %v215
    %v217 = vmul.f32 %v211, 1.442695
    %v218 = vpow.pop %v217
    %v219 = vmul.f32 %v212, 1.442695
    %v220 = vpow.pop %v219
    %222 = vset.pattern.permute.xlu0 0
    %223 = vperm.xlu0 %222, %v205
    %v224 = vpop.permute.xlu0 %223
    %227 = vset.pattern.permute.xlu0 0
    %228 = vperm.xlu0 %227, %v206
    %v229 = vpop.permute.xlu0 %228
    %232 = vset.pattern.permute.xlu0 0
    %233 = vperm.xlu0 %232, %v207
    %v234 = vpop.permute.xlu0 %233
    %237 = vset.pattern.permute.xlu0 0
    %238 = vperm.xlu0 %237, %v208
    %v239 = vpop.permute.xlu0 %238
    %v241 = vsub.f32 %v188, %v224
    %v242 = vsub.f32 %v190, %v229
    %v243 = vsub.f32 %v193, %v234
    %v244 = vsub.f32 %v195, %v239
    %v245 = vmul.f32 %v241, 1.442695
    %v246 = vpow.pop %v245
    %v247 = vmul.f32 %v242, 1.442695
    %v248 = vpow.pop %v247
    %v249 = vmul.f32 %v243, 1.442695
    %v250 = vpow.pop %v249
    %v251 = vmul.f32 %v244, 1.442695
    %v252 = vpow.pop %v251
    %v253 = vpack.c.bf16 %v248, %v246
    %v254 = vpack.c.bf16 %v252, %v250
    %v271 = vunpack.c.l.b16 %v56
    %v272 = vunpack.c.l.b16 %v57
    %v273 = vunpack.c.l.b16 %v58
    %v274 = vunpack.c.l.b16 %v59
    %v275 = vunpack.c.l.b16 %v60
    %v276 = vunpack.c.l.b16 %v61
    %v277 = vunpack.c.l.b16 %v62
    %v278 = vunpack.c.l.b16 %v63
    %v279 = vunpack.c.l.b16 %v64
    %v280 = vunpack.c.l.b16 %v65
    %v281 = vunpack.c.l.b16 %v66
    %v282 = vunpack.c.l.b16 %v67
    %v283 = vunpack.c.l.b16 %v68
    %v284 = vunpack.c.l.b16 %v69
    %v285 = vunpack.c.l.b16 %v70
    %v286 = vunpack.c.l.b16 %v71
    %v287 = vpack.c.b16 %v272, %v271
    %v288 = vpack.c.b16 %v274, %v273
    %v289 = vpack.c.b16 %v276, %v275
    %v290 = vpack.c.b16 %v278, %v277
    %v291 = vpack.c.b16 %v280, %v279
    %v292 = vpack.c.b16 %v282, %v281
    %v293 = vpack.c.b16 %v284, %v283
    %v294 = vpack.c.b16 %v286, %v285
    %303 = vmatpush.bf16.msra.mxu0 %v294
    %304 = vmatpush.bf16.msra.mxu0 %v293
    %305 = vmatpush.bf16.msra.mxu0 %v292
    %306 = vmatpush.bf16.msra.mxu0 %v291
    %307 = vmatpush.bf16.msra.mxu0 %v290
    %308 = vmatpush.bf16.msra.mxu0 %v289
    %309 = vmatpush.bf16.msra.mxu0 %v288
    %310 = vmatpush.bf16.msra.mxu0 %v287
    %311 = vmatmul.bf16.gmra.mxu0 %v253
    %v312 = vpop.f32.mrf.mxu0
    %v313 = vadd.f32 0.0, %v312
    %v314 = vpop.f32.mrf.mxu0
    %v315 = vadd.f32 0.0, %v314
    %316 = vmatmul.bf16.gmra.mxu0 %v254
    %v317 = vpop.f32.mrf.mxu0
    %v318 = vadd.f32 0.0, %v317
    %v319 = vpop.f32.mrf.mxu0
    %v320 = vadd.f32 0.0, %v319
    %321 = vdwg.mxu0
    %v322 = vmul.f32 %v214, %v93
    %v323 = vmul.f32 %v216, %v94
    %v324 = vmul.f32 %v218, %v95
    %v325 = vmul.f32 %v220, %v96
    %330 = vrot.lane.b32.xlu0 %v313, 120
    %v331 = vpop.permute.xlu0 %330
    %332 = vrot.lane.b32.xlu0 %v315, 120
    %v333 = vpop.permute.xlu0 %332
    %334 = vrot.lane.b32.xlu0 %v318, 120
    %v335 = vpop.permute.xlu0 %334
    %336 = vrot.lane.b32.xlu0 %v320, 120
    %v337 = vpop.permute.xlu0 %336
    %v342 = vadd.f32 %v322, %v331
    %v343 = vadd.f32 %v323, %v333
    %v344 = vadd.f32 %v324, %v335
    %v345 = vadd.f32 %v325, %v337
    %346 = vrot.lane.b32.xlu0 %v105, 120
    %v347 = vpop.permute.xlu0 %346
    %348 = vrot.lane.b32.xlu0 %v106, 120
    %v349 = vpop.permute.xlu0 %348
    %350 = vrot.lane.b32.xlu0 %v139, 120
    %v351 = vpop.permute.xlu0 %350
    %352 = vrot.lane.b32.xlu0 %v140, 120
    %v353 = vpop.permute.xlu0 %352
    %354 = vrot.lane.b32.xlu0 %v141, 120
    %v355 = vpop.permute.xlu0 %354
    %356 = vrot.lane.b32.xlu0 %v142, 120
    %v357 = vpop.permute.xlu0 %356
    %358 = vrot.lane.b32.xlu0 %v143, 120
    %v359 = vpop.permute.xlu0 %358
    %360 = vrot.lane.b32.xlu0 %v144, 120
    %v361 = vpop.permute.xlu0 %360
    %362 = vrot.lane.b32.xlu0 %v145, 120
    %v363 = vpop.permute.xlu0 %362
    %364 = vrot.lane.b32.xlu0 %v146, 120
    %v365 = vpop.permute.xlu0 %364
    %v367 = vsel %vm147, %v347, 0
    %v370 = vsel %vm147, %v349, 0
    %v373 = vsel %vm147, %v351, 0
    %v376 = vsel %vm147, %v353, 0
    %v379 = vsel %vm147, %v355, 0
    %v382 = vsel %vm147, %v357, 0
    %v385 = vsel %vm147, %v359, 0
    %v388 = vsel %vm147, %v361, 0
    %v391 = vsel %vm147, %v363, 0
    %v394 = vsel %vm147, %v365, 0
    %396 = vmatpush.bf16.xpose.msra.mxu0 %v394
    %397 = vmatpush.bf16.xpose.msra.mxu0 %v391
    %398 = vmatpush.bf16.xpose.msra.mxu0 %v388
    %399 = vmatpush.bf16.xpose.msra.mxu0 %v385
    %400 = vmatpush.bf16.xpose.msra.mxu0 %v382
    %401 = vmatpush.bf16.xpose.msra.mxu0 %v379
    %402 = vmatpush.bf16.xpose.msra.mxu0 %v376
    %403 = vmatpush.bf16.xpose.msra.mxu0 %v373
    %404 = vmatmul.bf16.gmra.mxu0 %v367
    %v405 = vpop.f32.mrf.mxu0
    %v406 = vadd.f32 %v85, %v405
    %v407 = vpop.f32.mrf.mxu0
    %v408 = vadd.f32 %v86, %v407
    %409 = vmatmul.bf16.gmra.mxu0 %v370
    %v410 = vpop.f32.mrf.mxu0
    %v411 = vadd.f32 %v87, %v410
    %v412 = vpop.f32.mrf.mxu0
    %v413 = vadd.f32 %v88, %v412
    %414 = vdwg.mxu0
    %415 = vmax.xlane.f32.xlu0 %v406
    %v416 = vpop.xlane.xlu0 %415
    %417 = vmax.xlane.f32.xlu0 %v408
    %v418 = vpop.xlane.xlu0 %417
    %419 = vmax.xlane.f32.xlu0 %v411
    %v420 = vpop.xlane.xlu0 %419
    %421 = vmax.xlane.f32.xlu0 %v413
    %v422 = vpop.xlane.xlu0 %421
    %v423 = vmax.f32 %v89, %v416
    %v424 = vmax.f32 %v90, %v418
    %v425 = vmax.f32 %v91, %v420
    %v426 = vmax.f32 %v92, %v422
    %v427 = vsub.f32 %v89, %v423
    %v428 = vsub.f32 %v90, %v424
    %v429 = vsub.f32 %v91, %v425
    %v430 = vsub.f32 %v92, %v426
    %v431 = vmul.f32 %v427, 1.442695
    %v432 = vpow.pop %v431
    %v433 = vmul.f32 %v428, 1.442695
    %v434 = vpow.pop %v433
    %v435 = vmul.f32 %v429, 1.442695
    %v436 = vpow.pop %v435
    %v437 = vmul.f32 %v430, 1.442695
    %v438 = vpow.pop %v437
    %440 = vset.pattern.permute.xlu0 1
    %441 = vperm.xlu0 %440, %v423
    %v442 = vpop.permute.xlu0 %441
    %445 = vset.pattern.permute.xlu0 1
    %446 = vperm.xlu0 %445, %v424
    %v447 = vpop.permute.xlu0 %446
    %450 = vset.pattern.permute.xlu0 1
    %451 = vperm.xlu0 %450, %v425
    %v452 = vpop.permute.xlu0 %451
    %455 = vset.pattern.permute.xlu0 1
    %456 = vperm.xlu0 %455, %v426
    %v457 = vpop.permute.xlu0 %456
    %v459 = vsub.f32 %v406, %v442
    %v460 = vsub.f32 %v408, %v447
    %v461 = vsub.f32 %v411, %v452
    %v462 = vsub.f32 %v413, %v457
    %v463 = vmul.f32 %v459, 1.442695
    %v464 = vpow.pop %v463
    %v465 = vmul.f32 %v460, 1.442695
    %v466 = vpow.pop %v465
    %v467 = vmul.f32 %v461, 1.442695
    %v468 = vpow.pop %v467
    %v469 = vmul.f32 %v462, 1.442695
    %v470 = vpow.pop %v469
    %v471 = vpack.c.bf16 %v466, %v464
    %v472 = vpack.c.bf16 %v470, %v468
    %473 = vrot.lane.b32.xlu0 %v287, 119
    %v474 = vpop.permute.xlu0 %473
    %475 = vrot.lane.b32.xlu0 %v288, 119
    %v476 = vpop.permute.xlu0 %475
    %477 = vrot.lane.b32.xlu0 %v289, 119
    %v478 = vpop.permute.xlu0 %477
    %479 = vrot.lane.b32.xlu0 %v290, 119
    %v480 = vpop.permute.xlu0 %479
    %481 = vrot.lane.b32.xlu0 %v291, 119
    %v482 = vpop.permute.xlu0 %481
    %483 = vrot.lane.b32.xlu0 %v292, 119
    %v484 = vpop.permute.xlu0 %483
    %485 = vrot.lane.b32.xlu0 %v293, 119
    %v486 = vpop.permute.xlu0 %485
    %487 = vrot.lane.b32.xlu0 %v294, 119
    %v488 = vpop.permute.xlu0 %487
    %497 = vmatpush.bf16.msra.mxu0 %v488
    %498 = vmatpush.bf16.msra.mxu0 %v486
    %499 = vmatpush.bf16.msra.mxu0 %v484
    %500 = vmatpush.bf16.msra.mxu0 %v482
    %501 = vmatpush.bf16.msra.mxu0 %v480
    %502 = vmatpush.bf16.msra.mxu0 %v478
    %503 = vmatpush.bf16.msra.mxu0 %v476
    %504 = vmatpush.bf16.msra.mxu0 %v474
    %505 = vmatmul.bf16.gmra.mxu0 %v471
    %v506 = vpop.f32.mrf.mxu0
    %v507 = vadd.f32 0.0, %v506
    %v508 = vpop.f32.mrf.mxu0
    %v509 = vadd.f32 0.0, %v508
    %510 = vmatmul.bf16.gmra.mxu0 %v472
    %v511 = vpop.f32.mrf.mxu0
    %v512 = vadd.f32 0.0, %v511
    %v513 = vpop.f32.mrf.mxu0
    %v514 = vadd.f32 0.0, %v513
    %515 = vdwg.mxu0
    %v516 = vmul.f32 %v432, %v93
    %v517 = vmul.f32 %v434, %v94
    %v518 = vmul.f32 %v436, %v95
    %v519 = vmul.f32 %v438, %v96
    %524 = vrot.lane.b32.xlu0 %v507, 121
    %v525 = vpop.permute.xlu0 %524
    %526 = vrot.lane.b32.xlu0 %v509, 121
    %v527 = vpop.permute.xlu0 %526
    %528 = vrot.lane.b32.xlu0 %v512, 121
    %v529 = vpop.permute.xlu0 %528
    %530 = vrot.lane.b32.xlu0 %v514, 121
    %v531 = vpop.permute.xlu0 %530
    %v536 = vadd.f32 %v516, %v525
    %v537 = vadd.f32 %v517, %v527
    %v538 = vadd.f32 %v518, %v529
    %v539 = vadd.f32 %v519, %v531
    %540 = vrot.lane.b32.xlu0 %v105, 112
    %v541 = vpop.permute.xlu0 %540
    %542 = vrot.lane.b32.xlu0 %v106, 112
    %v543 = vpop.permute.xlu0 %542
    %544 = vrot.lane.b32.xlu0 %v139, 112
    %v545 = vpop.permute.xlu0 %544
    %546 = vrot.lane.b32.xlu0 %v140, 112
    %v547 = vpop.permute.xlu0 %546
    %548 = vrot.lane.b32.xlu0 %v141, 112
    %v549 = vpop.permute.xlu0 %548
    %550 = vrot.lane.b32.xlu0 %v142, 112
    %v551 = vpop.permute.xlu0 %550
    %552 = vrot.lane.b32.xlu0 %v143, 112
    %v553 = vpop.permute.xlu0 %552
    %554 = vrot.lane.b32.xlu0 %v144, 112
    %v555 = vpop.permute.xlu0 %554
    %556 = vrot.lane.b32.xlu0 %v145, 112
    %v557 = vpop.permute.xlu0 %556
    %558 = vrot.lane.b32.xlu0 %v146, 112
    %v559 = vpop.permute.xlu0 %558
    %v561 = vsel %vm147, %v541, 0
    %v564 = vsel %vm147, %v543, 0
    %v567 = vsel %vm147, %v545, 0
    %v570 = vsel %vm147, %v547, 0
    %v573 = vsel %vm147, %v549, 0
    %v576 = vsel %vm147, %v551, 0
    %v579 = vsel %vm147, %v553, 0
    %v582 = vsel %vm147, %v555, 0
    %v585 = vsel %vm147, %v557, 0
    %v588 = vsel %vm147, %v559, 0
    %590 = vmatpush.bf16.xpose.msra.mxu0 %v588
    %591 = vmatpush.bf16.xpose.msra.mxu0 %v585
    %592 = vmatpush.bf16.xpose.msra.mxu0 %v582
    %593 = vmatpush.bf16.xpose.msra.mxu0 %v579
    %594 = vmatpush.bf16.xpose.msra.mxu0 %v576
    %595 = vmatpush.bf16.xpose.msra.mxu0 %v573
    %596 = vmatpush.bf16.xpose.msra.mxu0 %v570
    %597 = vmatpush.bf16.xpose.msra.mxu0 %v567
    %598 = vmatmul.bf16.gmra.mxu0 %v561
    %v599 = vpop.f32.mrf.mxu0
    %v600 = vadd.f32 %v85, %v599
    %v601 = vpop.f32.mrf.mxu0
    %v602 = vadd.f32 %v86, %v601
    %603 = vmatmul.bf16.gmra.mxu0 %v564
    %v604 = vpop.f32.mrf.mxu0
    %v605 = vadd.f32 %v87, %v604
    %v606 = vpop.f32.mrf.mxu0
    %v607 = vadd.f32 %v88, %v606
    %608 = vdwg.mxu0
    %609 = vmax.xlane.f32.xlu0 %v600
    %v610 = vpop.xlane.xlu0 %609
    %611 = vmax.xlane.f32.xlu0 %v602
    %v612 = vpop.xlane.xlu0 %611
    %613 = vmax.xlane.f32.xlu0 %v605
    %v614 = vpop.xlane.xlu0 %613
    %615 = vmax.xlane.f32.xlu0 %v607
    %v616 = vpop.xlane.xlu0 %615
    %v617 = vmax.f32 %v89, %v610
    %v618 = vmax.f32 %v90, %v612
    %v619 = vmax.f32 %v91, %v614
    %v620 = vmax.f32 %v92, %v616
    %v621 = vsub.f32 %v89, %v617
    %v622 = vsub.f32 %v90, %v618
    %v623 = vsub.f32 %v91, %v619
    %v624 = vsub.f32 %v92, %v620
    %v625 = vmul.f32 %v621, 1.442695
    %v626 = vpow.pop %v625
    %v627 = vmul.f32 %v622, 1.442695
    %v628 = vpow.pop %v627
    %v629 = vmul.f32 %v623, 1.442695
    %v630 = vpow.pop %v629
    %v631 = vmul.f32 %v624, 1.442695
    %v632 = vpow.pop %v631
    %634 = vset.pattern.permute.xlu0 2
    %635 = vperm.xlu0 %634, %v617
    %v636 = vpop.permute.xlu0 %635
    %639 = vset.pattern.permute.xlu0 2
    %640 = vperm.xlu0 %639, %v618
    %v641 = vpop.permute.xlu0 %640
    %644 = vset.pattern.permute.xlu0 2
    %645 = vperm.xlu0 %644, %v619
    %v646 = vpop.permute.xlu0 %645
    %649 = vset.pattern.permute.xlu0 2
    %650 = vperm.xlu0 %649, %v620
    %v651 = vpop.permute.xlu0 %650
    %v653 = vsub.f32 %v600, %v636
    %v654 = vsub.f32 %v602, %v641
    %v655 = vsub.f32 %v605, %v646
    %v656 = vsub.f32 %v607, %v651
    %v657 = vmul.f32 %v653, 1.442695
    %v658 = vpow.pop %v657
    %v659 = vmul.f32 %v654, 1.442695
    %v660 = vpow.pop %v659
    %v661 = vmul.f32 %v655, 1.442695
    %v662 = vpow.pop %v661
    %v663 = vmul.f32 %v656, 1.442695
    %v664 = vpow.pop %v663
    %v665 = vpack.c.bf16 %v660, %v658
    %v666 = vpack.c.bf16 %v664, %v662
    %667 = vrot.lane.b32.xlu0 %v287, 110
    %v668 = vpop.permute.xlu0 %667
    %669 = vrot.lane.b32.xlu0 %v288, 110
    %v670 = vpop.permute.xlu0 %669
    %671 = vrot.lane.b32.xlu0 %v289, 110
    %v672 = vpop.permute.xlu0 %671
    %673 = vrot.lane.b32.xlu0 %v290, 110
    %v674 = vpop.permute.xlu0 %673
    %675 = vrot.lane.b32.xlu0 %v291, 110
    %v676 = vpop.permute.xlu0 %675
    %677 = vrot.lane.b32.xlu0 %v292, 110
    %v678 = vpop.permute.xlu0 %677
    %679 = vrot.lane.b32.xlu0 %v293, 110
    %v680 = vpop.permute.xlu0 %679
    %681 = vrot.lane.b32.xlu0 %v294, 110
    %v682 = vpop.permute.xlu0 %681
    %691 = vmatpush.bf16.msra.mxu0 %v682
    %692 = vmatpush.bf16.msra.mxu0 %v680
    %693 = vmatpush.bf16.msra.mxu0 %v678
    %694 = vmatpush.bf16.msra.mxu0 %v676
    %695 = vmatpush.bf16.msra.mxu0 %v674
    %696 = vmatpush.bf16.msra.mxu0 %v672
    %697 = vmatpush.bf16.msra.mxu0 %v670
    %698 = vmatpush.bf16.msra.mxu0 %v668
    %699 = vmatmul.bf16.gmra.mxu0 %v665
    %v700 = vpop.f32.mrf.mxu0
    %v701 = vadd.f32 0.0, %v700
    %v702 = vpop.f32.mrf.mxu0
    %v703 = vadd.f32 0.0, %v702
    %704 = vmatmul.bf16.gmra.mxu0 %v666
    %v705 = vpop.f32.mrf.mxu0
    %v706 = vadd.f32 0.0, %v705
    %v707 = vpop.f32.mrf.mxu0
    %v708 = vadd.f32 0.0, %v707
    %709 = vdwg.mxu0
    %v710 = vmul.f32 %v626, %v93
    %v711 = vmul.f32 %v628, %v94
    %v712 = vmul.f32 %v630, %v95
    %v713 = vmul.f32 %v632, %v96
    %718 = vrot.lane.b32.xlu0 %v701, 122
    %v719 = vpop.permute.xlu0 %718
    %720 = vrot.lane.b32.xlu0 %v703, 122
    %v721 = vpop.permute.xlu0 %720
    %722 = vrot.lane.b32.xlu0 %v706, 122
    %v723 = vpop.permute.xlu0 %722
    %724 = vrot.lane.b32.xlu0 %v708, 122
    %v725 = vpop.permute.xlu0 %724
    %v730 = vadd.f32 %v710, %v719
    %v731 = vadd.f32 %v711, %v721
    %v732 = vadd.f32 %v712, %v723
    %v733 = vadd.f32 %v713, %v725
    %734 = vrot.lane.b32.xlu0 %v105, 104
    %v735 = vpop.permute.xlu0 %734
    %736 = vrot.lane.b32.xlu0 %v106, 104
    %v737 = vpop.permute.xlu0 %736
    %738 = vrot.lane.b32.xlu0 %v139, 104
    %v739 = vpop.permute.xlu0 %738
    %740 = vrot.lane.b32.xlu0 %v140, 104
    %v741 = vpop.permute.xlu0 %740
    %742 = vrot.lane.b32.xlu0 %v141, 104
    %v743 = vpop.permute.xlu0 %742
    %744 = vrot.lane.b32.xlu0 %v142, 104
    %v745 = vpop.permute.xlu0 %744
    %746 = vrot.lane.b32.xlu0 %v143, 104
    %v747 = vpop.permute.xlu0 %746
    %748 = vrot.lane.b32.xlu0 %v144, 104
    %v749 = vpop.permute.xlu0 %748
    %750 = vrot.lane.b32.xlu0 %v145, 104
    %v751 = vpop.permute.xlu0 %750
    %752 = vrot.lane.b32.xlu0 %v146, 104
    %v753 = vpop.permute.xlu0 %752
    %v755 = vsel %vm147, %v735, 0
    %v758 = vsel %vm147, %v737, 0
    %v761 = vsel %vm147, %v739, 0
    %v764 = vsel %vm147, %v741, 0
    %v767 = vsel %vm147, %v743, 0
    %v770 = vsel %vm147, %v745, 0
    %v773 = vsel %vm147, %v747, 0
    %v776 = vsel %vm147, %v749, 0
    %v779 = vsel %vm147, %v751, 0
    %v782 = vsel %vm147, %v753, 0
    %784 = vmatpush.bf16.xpose.msra.mxu0 %v782
    %785 = vmatpush.bf16.xpose.msra.mxu0 %v779
    %786 = vmatpush.bf16.xpose.msra.mxu0 %v776
    %787 = vmatpush.bf16.xpose.msra.mxu0 %v773
    %788 = vmatpush.bf16.xpose.msra.mxu0 %v770
    %789 = vmatpush.bf16.xpose.msra.mxu0 %v767
    %790 = vmatpush.bf16.xpose.msra.mxu0 %v764
    %791 = vmatpush.bf16.xpose.msra.mxu0 %v761
    %792 = vmatmul.bf16.gmra.mxu0 %v755
    %v793 = vpop.f32.mrf.mxu0
    %v794 = vadd.f32 %v85, %v793
    %v795 = vpop.f32.mrf.mxu0
    %v796 = vadd.f32 %v86, %v795
    %797 = vmatmul.bf16.gmra.mxu0 %v758
    %v798 = vpop.f32.mrf.mxu0
    %v799 = vadd.f32 %v87, %v798
    %v800 = vpop.f32.mrf.mxu0
    %v801 = vadd.f32 %v88, %v800
    %802 = vdwg.mxu0
    %803 = vmax.xlane.f32.xlu0 %v794
    %v804 = vpop.xlane.xlu0 %803
    %805 = vmax.xlane.f32.xlu0 %v796
    %v806 = vpop.xlane.xlu0 %805
    %807 = vmax.xlane.f32.xlu0 %v799
    %v808 = vpop.xlane.xlu0 %807
    %809 = vmax.xlane.f32.xlu0 %v801
    %v810 = vpop.xlane.xlu0 %809
    %v811 = vmax.f32 %v89, %v804
    %v812 = vmax.f32 %v90, %v806
    %v813 = vmax.f32 %v91, %v808
    %v814 = vmax.f32 %v92, %v810
    %v815 = vsub.f32 %v89, %v811
    %v816 = vsub.f32 %v90, %v812
    %v817 = vsub.f32 %v91, %v813
    %v818 = vsub.f32 %v92, %v814
    %v819 = vmul.f32 %v815, 1.442695
    %v820 = vpow.pop %v819
    %v821 = vmul.f32 %v816, 1.442695
    %v822 = vpow.pop %v821
    %v823 = vmul.f32 %v817, 1.442695
    %v824 = vpow.pop %v823
    %v825 = vmul.f32 %v818, 1.442695
    %v826 = vpow.pop %v825
    %828 = vset.pattern.permute.xlu0 3
    %829 = vperm.xlu0 %828, %v811
    %v830 = vpop.permute.xlu0 %829
    %833 = vset.pattern.permute.xlu0 3
    %834 = vperm.xlu0 %833, %v812
    %v835 = vpop.permute.xlu0 %834
    %838 = vset.pattern.permute.xlu0 3
    %839 = vperm.xlu0 %838, %v813
    %v840 = vpop.permute.xlu0 %839
    %843 = vset.pattern.permute.xlu0 3
    %844 = vperm.xlu0 %843, %v814
    %v845 = vpop.permute.xlu0 %844
    %v847 = vsub.f32 %v794, %v830
    %v848 = vsub.f32 %v796, %v835
    %v849 = vsub.f32 %v799, %v840
    %v850 = vsub.f32 %v801, %v845
    %v851 = vmul.f32 %v847, 1.442695
    %v852 = vpow.pop %v851
    %v853 = vmul.f32 %v848, 1.442695
    %v854 = vpow.pop %v853
    %v855 = vmul.f32 %v849, 1.442695
    %v856 = vpow.pop %v855
    %v857 = vmul.f32 %v850, 1.442695
    %v858 = vpow.pop %v857
    %v859 = vpack.c.bf16 %v854, %v852
    %v860 = vpack.c.bf16 %v858, %v856
    %861 = vrot.lane.b32.xlu0 %v287, 101
    %v862 = vpop.permute.xlu0 %861
    %863 = vrot.lane.b32.xlu0 %v288, 101
    %v864 = vpop.permute.xlu0 %863
    %865 = vrot.lane.b32.xlu0 %v289, 101
    %v866 = vpop.permute.xlu0 %865
    %867 = vrot.lane.b32.xlu0 %v290, 101
    %v868 = vpop.permute.xlu0 %867
    %869 = vrot.lane.b32.xlu0 %v291, 101
    %v870 = vpop.permute.xlu0 %869
    %871 = vrot.lane.b32.xlu0 %v292, 101
    %v872 = vpop.permute.xlu0 %871
    %873 = vrot.lane.b32.xlu0 %v293, 101
    %v874 = vpop.permute.xlu0 %873
    %875 = vrot.lane.b32.xlu0 %v294, 101
    %v876 = vpop.permute.xlu0 %875
    %885 = vmatpush.bf16.msra.mxu0 %v876
    %886 = vmatpush.bf16.msra.mxu0 %v874
    %887 = vmatpush.bf16.msra.mxu0 %v872
    %888 = vmatpush.bf16.msra.mxu0 %v870
    %889 = vmatpush.bf16.msra.mxu0 %v868
    %890 = vmatpush.bf16.msra.mxu0 %v866
    %891 = vmatpush.bf16.msra.mxu0 %v864
    %892 = vmatpush.bf16.msra.mxu0 %v862
    %893 = vmatmul.bf16.gmra.mxu0 %v859
    %v894 = vpop.f32.mrf.mxu0
    %v895 = vadd.f32 0.0, %v894
    %v896 = vpop.f32.mrf.mxu0
    %v897 = vadd.f32 0.0, %v896
    %898 = vmatmul.bf16.gmra.mxu0 %v860
    %v899 = vpop.f32.mrf.mxu0
    %v900 = vadd.f32 0.0, %v899
    %v901 = vpop.f32.mrf.mxu0
    %v902 = vadd.f32 0.0, %v901
    %903 = vdwg.mxu0
    %v904 = vmul.f32 %v820, %v93
    %v905 = vmul.f32 %v822, %v94
    %v906 = vmul.f32 %v824, %v95
    %v907 = vmul.f32 %v826, %v96
    %912 = vrot.lane.b32.xlu0 %v895, 123
    %v913 = vpop.permute.xlu0 %912
    %914 = vrot.lane.b32.xlu0 %v897, 123
    %v915 = vpop.permute.xlu0 %914
    %916 = vrot.lane.b32.xlu0 %v900, 123
    %v917 = vpop.permute.xlu0 %916
    %918 = vrot.lane.b32.xlu0 %v902, 123
    %v919 = vpop.permute.xlu0 %918
    %v924 = vadd.f32 %v904, %v913
    %v925 = vadd.f32 %v905, %v915
    %v926 = vadd.f32 %v906, %v917
    %v927 = vadd.f32 %v907, %v919
    %vm928 = vcmask 7168
    %v929 = vsel %vm928, %v205, %v423
    %v930 = vsel %vm928, %v206, %v424
    %v931 = vsel %vm928, %v207, %v425
    %v932 = vsel %vm928, %v208, %v426
    %vm933 = vcmask 15360
    %v934 = vsel %vm933, %v929, %v617
    %v935 = vsel %vm933, %v930, %v618
    %v936 = vsel %vm933, %v931, %v619
    %v937 = vsel %vm933, %v932, %v620
    %vm938 = vcmask 23552
    %v939 = vsel %vm938, %v934, %v811
    %v940 = vsel %vm938, %v935, %v812
    %v941 = vsel %vm938, %v936, %v813
    %v942 = vsel %vm938, %v937, %v814
    %vm943 = vcmask 31744
    %944 = vst.msk [vmem:[#allocation2] sm:$0xff] %vm943, %v939
    %945 = vst.msk [vmem:[#allocation2 + $0x8] sm:$0xff] %vm943, %v940
    %946 = vst.msk [vmem:[#allocation2 + $0x10] sm:$0xff] %vm943, %v941
    %947 = vst.msk [vmem:[#allocation2 + $0x18] sm:$0xff] %vm943, %v942
    %v948 = vsel %vm928, %v342, %v536
    %v949 = vsel %vm928, %v343, %v537
    %v950 = vsel %vm928, %v344, %v538
    %v951 = vsel %vm928, %v345, %v539
    %v952 = vsel %vm933, %v948, %v730
    %v953 = vsel %vm933, %v949, %v731
    %v954 = vsel %vm933, %v950, %v732
    %v955 = vsel %vm933, %v951, %v733
    %v956 = vsel %vm938, %v952, %v924
    %v957 = vsel %vm938, %v953, %v925
    %v958 = vsel %vm938, %v954, %v926
    %v959 = vsel %vm938, %v955, %v927
    %960 = vst.msk [vmem:[#allocation3] sm:$0xff] %vm943, %v956
    %961 = vst.msk [vmem:[#allocation3 + $0x8] sm:$0xff] %vm943, %v957
    %962 = vst.msk [vmem:[#allocation3 + $0x10] sm:$0xff] %vm943, %v958
    %963 = vst.msk [vmem:[#allocation3 + $0x18] sm:$0xff] %vm943, %v959
    %965 = vset.pattern.permute.xlu0 0
    %966 = vperm.xlu0 %965, %v214
    %v967 = vpop.permute.xlu0 %966
    %970 = vset.pattern.permute.xlu0 0
    %971 = vperm.xlu0 %970, %v216
    %v972 = vpop.permute.xlu0 %971
    %975 = vset.pattern.permute.xlu0 0
    %976 = vperm.xlu0 %975, %v218
    %v977 = vpop.permute.xlu0 %976
    %980 = vset.pattern.permute.xlu0 0
    %981 = vperm.xlu0 %980, %v220
    %v982 = vpop.permute.xlu0 %981
    %985 = vset.pattern.permute.xlu0 1
    %986 = vperm.xlu0 %985, %v432
    %v987 = vpop.permute.xlu0 %986
    %990 = vset.pattern.permute.xlu0 1
    %991 = vperm.xlu0 %990, %v434
    %v992 = vpop.permute.xlu0 %991
    %995 = vset.pattern.permute.xlu0 1
    %996 = vperm.xlu0 %995, %v436
    %v997 = vpop.permute.xlu0 %996
    %1000 = vset.pattern.permute.xlu0 1
    %1001 = vperm.xlu0 %1000, %v438
    %v1002 = vpop.permute.xlu0 %1001
    %1005 = vset.pattern.permute.xlu0 2
    %1006 = vperm.xlu0 %1005, %v626
    %v1007 = vpop.permute.xlu0 %1006
    %1010 = vset.pattern.permute.xlu0 2
    %1011 = vperm.xlu0 %1010, %v628
    %v1012 = vpop.permute.xlu0 %1011
    %1015 = vset.pattern.permute.xlu0 2
    %1016 = vperm.xlu0 %1015, %v630
    %v1017 = vpop.permute.xlu0 %1016
    %1020 = vset.pattern.permute.xlu0 2
    %1021 = vperm.xlu0 %1020, %v632
    %v1022 = vpop.permute.xlu0 %1021
    %1025 = vset.pattern.permute.xlu0 3
    %1026 = vperm.xlu0 %1025, %v820
    %v1027 = vpop.permute.xlu0 %1026
    %1030 = vset.pattern.permute.xlu0 3
    %1031 = vperm.xlu0 %1030, %v822
    %v1032 = vpop.permute.xlu0 %1031
    %1035 = vset.pattern.permute.xlu0 3
    %1036 = vperm.xlu0 %1035, %v824
    %v1037 = vpop.permute.xlu0 %1036
    %1040 = vset.pattern.permute.xlu0 3
    %1041 = vperm.xlu0 %1040, %v826
    %v1042 = vpop.permute.xlu0 %1041
    %v1044 = vsel %vm147, %v967, %v987
    %v1045 = vsel %vm147, %v972, %v992
    %v1046 = vsel %vm147, %v977, %v997
    %v1047 = vsel %vm147, %v982, %v1002
    %vm1048 = vcmask 130048
    %v1049 = vsel %vm1048, %v1044, %v1007
    %v1050 = vsel %vm1048, %v1045, %v1012
    %v1051 = vsel %vm1048, %v1046, %v1017
    %v1052 = vsel %vm1048, %v1047, %v1022
    %vm1053 = vcmask 195584
    %v1054 = vsel %vm1053, %v1049, %v1027
    %v1055 = vsel %vm1053, %v1050, %v1032
    %v1056 = vsel %vm1053, %v1051, %v1037
    %v1057 = vsel %vm1053, %v1052, %v1042
    %1058 = vrot.lane.b32.xlu0 %v507, 8
    %v1059 = vpop.permute.xlu0 %1058
    %1060 = vrot.lane.b32.xlu0 %v509, 8
    %v1061 = vpop.permute.xlu0 %1060
    %1062 = vrot.lane.b32.xlu0 %v512, 8
    %v1063 = vpop.permute.xlu0 %1062
    %1064 = vrot.lane.b32.xlu0 %v514, 8
    %v1065 = vpop.permute.xlu0 %1064
    %1070 = vrot.lane.b32.xlu0 %v701, 16
    %v1071 = vpop.permute.xlu0 %1070
    %1072 = vrot.lane.b32.xlu0 %v703, 16
    %v1073 = vpop.permute.xlu0 %1072
    %1074 = vrot.lane.b32.xlu0 %v706, 16
    %v1075 = vpop.permute.xlu0 %1074
    %1076 = vrot.lane.b32.xlu0 %v708, 16
    %v1077 = vpop.permute.xlu0 %1076
    %1082 = vrot.lane.b32.xlu0 %v895, 24
    %v1083 = vpop.permute.xlu0 %1082
    %1084 = vrot.lane.b32.xlu0 %v897, 24
    %v1085 = vpop.permute.xlu0 %1084
    %1086 = vrot.lane.b32.xlu0 %v900, 24
    %v1087 = vpop.permute.xlu0 %1086
    %1088 = vrot.lane.b32.xlu0 %v902, 24
    %v1089 = vpop.permute.xlu0 %1088
    %v1094 = vsel %vm147, %v313, %v1059
    %v1095 = vsel %vm147, %v315, %v1061
    %v1096 = vsel %vm147, %v318, %v1063
    %v1097 = vsel %vm147, %v320, %v1065
    %v1098 = vsel %vm1048, %v1094, %v1071
    %v1099 = vsel %vm1048, %v1095, %v1073
    %v1100 = vsel %vm1048, %v1096, %v1075
    %v1101 = vsel %vm1048, %v1097, %v1077
    %v1102 = vsel %vm1053, %v1098, %v1083
    %v1103 = vsel %vm1053, %v1099, %v1085
    %v1104 = vsel %vm1053, %v1100, %v1087
    %v1105 = vsel %vm1053, %v1101, %v1089
    %v1106 = vld [vmem:[#allocation4] sm:$0xff]
    %v1107 = vld [vmem:[#allocation4 + $0x8] sm:$0xff]
    %v1108 = vld [vmem:[#allocation4 + $0x10] sm:$0xff]
    %v1109 = vld [vmem:[#allocation4 + $0x18] sm:$0xff]
    %v1110 = vmul.f32 %v1054, %v1106
    %v1111 = vmul.f32 %v1055, %v1107
    %v1112 = vmul.f32 %v1056, %v1108
    %v1113 = vmul.f32 %v1057, %v1109
    %v1114 = vadd.f32 %v1110, %v1102
    %v1115 = vadd.f32 %v1111, %v1103
    %v1116 = vadd.f32 %v1112, %v1104
    %v1117 = vadd.f32 %v1113, %v1105
    %vm1118 = vcmask 261120
    %1119 = vst.msk [vmem:[#allocation4] sm:$0xff] %vm1118, %v1114
    %1120 = vst.msk [vmem:[#allocation4 + $0x8] sm:$0xff] %vm1118, %v1115
    %1121 = vst.msk [vmem:[#allocation4 + $0x10] sm:$0xff] %vm1118, %v1116
    %1122 = vst.msk [vmem:[#allocation4 + $0x18] sm:$0xff] %vm1118, %v1117
    // Predicated region
    $region22: #{tpu_custom_call.1} parent=1 // pred_check
      %p1123 = pneg %p18
    $region23: #{tpu_custom_call.1} parent=1 // pred_check_branch
      %1125 = sbr.rel (%p1123) target = $region25
    $region24: #{tpu_custom_call.1} parent=1 // pred_region
      %v1126 = vld [vmem:[#allocation3] sm:$0xff]
      %v1127 = vld [vmem:[#allocation3 + $0x8] sm:$0xff]
      %v1128 = vld [vmem:[#allocation3 + $0x10] sm:$0xff]
      %v1129 = vld [vmem:[#allocation3 + $0x18] sm:$0xff]
      %v1130 = vmax.f32 %v1126, 1e-09
      %v1131 = vmax.f32 %v1127, 1e-09
      %v1132 = vmax.f32 %v1128, 1e-09
      %v1133 = vmax.f32 %v1129, 1e-09
      %v1134 = vrcp.pop %v1130
      %v1135 = vrcp.pop %v1131
      %v1136 = vrcp.pop %v1132
      %v1137 = vrcp.pop %v1133
      %1139 = vset.pattern.permute.xlu0 0
      %1140 = vperm.xlu0 %1139, %v1134
      %v1141 = vpop.permute.xlu0 %1140
      %1144 = vset.pattern.permute.xlu0 0
      %1145 = vperm.xlu0 %1144, %v1135
      %v1146 = vpop.permute.xlu0 %1145
      %1149 = vset.pattern.permute.xlu0 0
      %1150 = vperm.xlu0 %1149, %v1136
      %v1151 = vpop.permute.xlu0 %1150
      %1154 = vset.pattern.permute.xlu0 0
      %1155 = vperm.xlu0 %1154, %v1137
      %v1156 = vpop.permute.xlu0 %1155
      %1158 = vset.pattern.permute.xlu0 1
      %1159 = vperm.xlu0 %1158, %v1134
      %v1160 = vpop.permute.xlu0 %1159
      %1162 = vset.pattern.permute.xlu0 1
      %1163 = vperm.xlu0 %1162, %v1135
      %v1164 = vpop.permute.xlu0 %1163
      %1166 = vset.pattern.permute.xlu0 1
      %1167 = vperm.xlu0 %1166, %v1136
      %v1168 = vpop.permute.xlu0 %1167
      %1170 = vset.pattern.permute.xlu0 1
      %1171 = vperm.xlu0 %1170, %v1137
      %v1172 = vpop.permute.xlu0 %1171
      %1174 = vset.pattern.permute.xlu0 2
      %1175 = vperm.xlu0 %1174, %v1134
      %v1176 = vpop.permute.xlu0 %1175
      %1178 = vset.pattern.permute.xlu0 2
      %1179 = vperm.xlu0 %1178, %v1135
      %v1180 = vpop.permute.xlu0 %1179
      %1182 = vset.pattern.permute.xlu0 2
      %1183 = vperm.xlu0 %1182, %v1136
      %v1184 = vpop.permute.xlu0 %1183
      %1186 = vset.pattern.permute.xlu0 2
      %1187 = vperm.xlu0 %1186, %v1137
      %v1188 = vpop.permute.xlu0 %1187
      %1190 = vset.pattern.permute.xlu0 3
      %1191 = vperm.xlu0 %1190, %v1134
      %v1192 = vpop.permute.xlu0 %1191
      %1194 = vset.pattern.permute.xlu0 3
      %1195 = vperm.xlu0 %1194, %v1135
      %v1196 = vpop.permute.xlu0 %1195
      %1198 = vset.pattern.permute.xlu0 3
      %1199 = vperm.xlu0 %1198, %v1136
      %v1200 = vpop.permute.xlu0 %1199
      %1202 = vset.pattern.permute.xlu0 3
      %1203 = vperm.xlu0 %1202, %v1137
      %v1204 = vpop.permute.xlu0 %1203
      %v1206 = vsel %vm147, %v1141, %v1160
      %v1207 = vsel %vm147, %v1146, %v1164
      %v1208 = vsel %vm147, %v1151, %v1168
      %v1209 = vsel %vm147, %v1156, %v1172
      %v1210 = vsel %vm1048, %v1206, %v1176
      %v1211 = vsel %vm1048, %v1207, %v1180
      %v1212 = vsel %vm1048, %v1208, %v1184
      %v1213 = vsel %vm1048, %v1209, %v1188
      %v1214 = vsel %vm1053, %v1210, %v1192
      %v1215 = vsel %vm1053, %v1211, %v1196
      %v1216 = vsel %vm1053, %v1212, %v1200
      %v1217 = vsel %vm1053, %v1213, %v1204
      %v1218 = vld [vmem:[#allocation2] sm:$0xff]
      %v1219 = vld [vmem:[#allocation2 + $0x8] sm:$0xff]
      %v1220 = vld [vmem:[#allocation2 + $0x10] sm:$0xff]
      %v1221 = vld [vmem:[#allocation2 + $0x18] sm:$0xff]
      %vm1222 = vcmp.lt.f32.partialorder %v1218, -1e+25
      %vm1223 = vcmp.lt.f32.partialorder %v1219, -1e+25
      %vm1224 = vcmp.lt.f32.partialorder %v1220, -1e+25
      %vm1225 = vcmp.lt.f32.partialorder %v1221, -1e+25
      %v1226 = vld [vmem:[#allocation4] sm:$0xff]
      %v1227 = vld [vmem:[#allocation4 + $0x8] sm:$0xff]
      %v1228 = vld [vmem:[#allocation4 + $0x10] sm:$0xff]
      %v1229 = vld [vmem:[#allocation4 + $0x18] sm:$0xff]
      %v1230 = vmul.f32 %v1226, %v1214
      %v1231 = vmul.f32 %v1227, %v1215
      %v1232 = vmul.f32 %v1228, %v1216
      %v1233 = vmul.f32 %v1229, %v1217
      %v1234 = vsel %vm1222, 1, 0
      %v1235 = vsel %vm1223, 1, 0
      %v1236 = vsel %vm1224, 1, 0
      %v1237 = vsel %vm1225, 1, 0
      %1238 = vset.pattern.permute.xlu0 0
      %1239 = vperm.xlu0 %1238, %v1234
      %v1240 = vpop.permute.xlu0 %1239
      %1241 = vset.pattern.permute.xlu0 0
      %1242 = vperm.xlu0 %1241, %v1235
      %v1243 = vpop.permute.xlu0 %1242
      %1244 = vset.pattern.permute.xlu0 0
      %1245 = vperm.xlu0 %1244, %v1236
      %v1246 = vpop.permute.xlu0 %1245
      %1247 = vset.pattern.permute.xlu0 0
      %1248 = vperm.xlu0 %1247, %v1237
      %v1249 = vpop.permute.xlu0 %1248
      %vm1250 = vcmp.eq.s32.totalorder %v1240, 1
      %vm1251 = vcmp.eq.s32.totalorder %v1243, 1
      %vm1252 = vcmp.eq.s32.totalorder %v1246, 1
      %vm1253 = vcmp.eq.s32.totalorder %v1249, 1
      %v1254 = vsel %vm1250, 0.0, %v1230
      %v1255 = vsel %vm1251, 0.0, %v1231
      %v1256 = vsel %vm1252, 0.0, %v1232
      %v1257 = vsel %vm1253, 0.0, %v1233
      %1258 = vst.msk [vmem:[#allocation5] sm:$0xff] %vm1118, %v1254
      %1259 = vst.msk [vmem:[#allocation5 + $0x8] sm:$0xff] %vm1118, %v1255
      %1260 = vst.msk [vmem:[#allocation5 + $0x10] sm:$0xff] %vm1118, %v1256
      %1261 = vst.msk [vmem:[#allocation5 + $0x18] sm:$0xff] %vm1118, %v1257
    $region25: #{tpu_custom_call.1} parent=1 // pred_fallthru
      _
    // Predicated region
    $region26: #{tpu_custom_call.1} parent=1 // pred_check
      _
    $region27: #{tpu_custom_call.1} parent=1 // pred_check_branch
      %1263 = sbr.rel (0) target = $region29
    $region28: #{tpu_custom_call.1} parent=1 // pred_region
      %1265 = vsyncadd [#allocation6], 0
      %s1266 = sshll.u32 [#allocation5], 4
      %s1267 = int_to_ptr.vmem [resolvable:$true] %s1266
      %s1268 = sshll.u32 %s4, 4
      %s1269 = int_to_ptr.hbm [resolvable:$true] %s1268
      %1274 = dma.vmem_to_hbm [thread:$0]  %s1267, 512, %s1269, [#allocation6], 128, 128, 8
    $region29: #{tpu_custom_call.1} parent=1 // pred_fallthru
      _
    // Predicated region
    $region30: #{tpu_custom_call.1} parent=1 // pred_check
      _
    $region31: #{tpu_custom_call.1} parent=1 // pred_check_branch
      %1276 = sbr.rel (0) target = $region33
    $region32: #{tpu_custom_call.1} parent=1 // pred_region
      %1278 = dma.done [#allocation6], 512
    $region33: #{tpu_custom_call.1} parent=1 // pred_fallthru
      _
    %1279 = vsyncpa [#allocation6], 1

</llo_original>
